<compile_context>
chip_gen: v7x
topology: tpu7x:2x2x1
jax: 0.10.0
libtpu: 0.0.40
codegen_flags: <defaults>
</compile_context>

<pallas_src>
import math
from functools import partial

import jax
import jax.numpy as jnp
from jax.experimental import pallas as pl
from jax.experimental.pallas import tpu as pltpu


def _round_up(x, m):
    return ((x + m - 1) // m) * m


def _vmem_budget_bytes():
    """(working-set budget, vmem_limit_bytes), generation aware."""
    cap = 64 << 20
    try:
        cap = int(pltpu.get_tpu_info().vmem_capacity_bytes)
    except Exception:
        pass  # fall back to the conservative (v7x-safe) numbers
    if cap >= (96 << 20):            # v5e / v6e: 128 MiB physical per core
        return 80 << 20, 100 << 20
    return 28 << 20, 48 << 20        # v7x: 64 MiB physical per core


def _select_tiles(n, ho, wp, cin, coutp, budget):
    """Pick (row tile TR, cout tile TCO) against the VMEM working-set budget."""
    # Cout tile: full width unless the (double buffered) weight block gets too big.
    tco = 128
    for cand in (coutp, 2048, 1024, 512, 256, 128):
        if cand <= coutp and coutp % cand == 0 and 2 * 9 * cin * cand * 2 <= budget // 3:
            tco = cand
            break

    # Row tile: largest multiple of 8 whose per-step working set fits the budget.
    def need(tr):
        ls = (tr + 2) * wp + 2
        return (2 * ls * cin * 2            # x slab (bf16), double buffered
                + 2 * 9 * cin * tco * 2     # weight block (bf16), double buffered
                + 3 * tr * wp * tco * 4     # out block (x2, f32) + f32 accumulator
                + 2 * tr * wp * cin * 2)    # shifted-slice temporaries headroom

    tr = 8
    cand = 8
    ho8 = _round_up(ho, 8)
    while cand <= ho8:
        if need(cand) <= budget:
            tr = cand
        cand += 8

    # Keep >= 4 total grid steps so each v7x TensorCore still has >= 2 steps to pipeline.
    nt_min = -(-4 // max(n, 1))
    if nt_min > 1 and -(-ho // tr) < nt_min and ho > 8:
        tr = max(8, _round_up(-(-ho // nt_min), 8))
    return tr, tco


def _make_conv3x3_relu_kernel(tr, wp):
    """Kernel: out = relu(sum_{ki,kj} shift(x, ki, kj) @ w[ki, kj]), f32 accumulation."""
    m = tr * wp

    def kernel(x_ref, w_ref, o_ref):
        # x_ref: (LS, Cin) bf16 flattened (rows + halo, padded width) slab
        # w_ref: (9, Cin, TCO) bf16 ;  o_ref: (TR*Wp, TCO) f32
        acc = jnp.zeros((m, o_ref.shape[-1]), jnp.float32)
        for ki in range(3):
            for kj in range(3):
                start = ki * wp + kj
                a = x_ref[start:start + m, :]          # 3x3 tap built in VMEM, no HBM im2col
                acc = acc + jnp.dot(a, w_ref[ki * 3 + kj],
                                    preferred_element_type=jnp.float32)
        o_ref[...] = jnp.maximum(acc, 0.0).astype(o_ref.dtype)   # fused ReLU

    return kernel


def prepare_weight(w):
    """(Cout, Cin, 3, 3) PyTorch conv weight -> (9, Cin, Coutp) bf16, Coutp = round_up(Cout, 128).

    Hoisted out of the per-call path.  The zero-padded Cout columns keep kernel stores
    lane-dense; they are sliced off after the pallas_call.
    """
    cout, cin, kh, kw = w.shape
    coutp = _round_up(cout, 128)
    wt = jnp.transpose(w, (2, 3, 1, 0)).reshape(kh * kw, cin, cout).astype(jnp.bfloat16)
    if coutp != cout:
        wt = jnp.pad(wt, ((0, 0), (0, 0), (0, coutp - cout)))
    return wt


@partial(jax.jit, static_argnums=(2,))
def conv_relu_forward(x, w_mat, cout):
    """y = relu(conv3x3(x)); x: (N, Cin, H, W) f32, w_mat = prepare_weight(w), cout static."""
    n, cin, h, w = x.shape
    kk, cin_w, coutp = w_mat.shape
    assert kk == 9 and cin_w == cin and coutp % 128 == 0
    ho, wo = h, w
    wp = wo + 2

    budget, vmem_limit = _vmem_budget_bytes()
    tr, tco = _select_tiles(n, ho, wp, cin, coutp, budget)
    nt = -(-ho // tr)
    hop = nt * tr
    nco = coutp // tco
    ls = (tr + 2) * wp + 2
    m = tr * wp

    # NCHW -> NHWC bf16, spatial zero-pad (padding=1) + row pad to hop, flatten spatial,
    # then gather per-row-tile slabs with a 1-row halo.  This is the only restaging of
    # the activations; the 9x im2col matrix of the previous version never exists.
    xh = jnp.transpose(x, (0, 2, 3, 1)).astype(jnp.bfloat16)
    xp = jnp.pad(xh, ((0, 0), (1, 1 + hop - ho), (1, 1), (0, 0)))      # (n, hop+2, wp, cin)
    xf = jnp.pad(xp.reshape(n, (hop + 2) * wp, cin), ((0, 0), (0, 2), (0, 0)))
    row_idx = (jnp.arange(nt, dtype=jnp.int32) * (tr * wp))[:, None] \
        + jnp.arange(ls, dtype=jnp.int32)[None, :]
    x_tiled = jnp.take(xf, row_idx, axis=1)                            # (n, nt, ls, cin)

    flops = 2 * n * hop * wp * 9 * cin * coutp
    bytes_accessed = x_tiled.size * 2 + w_mat.size * 2 + n * nt * m * coutp * 4

    out = pl.pallas_call(
        _make_conv3x3_relu_kernel(tr, wp),
        out_shape=jax.ShapeDtypeStruct((n, nt, m, coutp), jnp.float32),
        grid_spec=pltpu.PrefetchScalarGridSpec(
            num_scalar_prefetch=0,
            grid=(n, nt, nco),
            in_specs=[
                pl.BlockSpec((None, None, ls, cin), lambda b, r, c: (b, r, 0, 0)),
                pl.BlockSpec((9, cin, tco), lambda b, r, c: (0, 0, c)),
            ],
            out_specs=pl.BlockSpec((None, None, m, tco), lambda b, r, c: (b, r, 0, c)),
        ),
        compiler_params=pltpu.CompilerParams(
            dimension_semantics=("parallel", "parallel", "parallel"),
            vmem_limit_bytes=vmem_limit,
        ),
        cost_estimate=pl.CostEstimate(flops=flops, transcendentals=0,
                                      bytes_accessed=bytes_accessed),
    )(x_tiled, w_mat)

    # Drop the 2 junk W columns per row group, the row padding and the Cout lane padding,
    # then back to NCHW (PyTorch layout).
    out = out.reshape(n, nt, tr, wp, coutp)[:, :, :, :wo, :]
    out = out.reshape(n, hop, wo, coutp)[:, :ho, :, :cout]
    return jnp.transpose(out, (0, 3, 1, 2)).astype(x.dtype)


if __name__ == "__main__":
    key = jax.random.PRNGKey(0)
    kx, kw_ = jax.random.split(key)

    N, Cin, Cout, H, W = 2, 4, 8, 16, 16
    x = jax.random.normal(kx, (N, Cin, H, W), jnp.float32)
    fan_in = Cin * 3 * 3
    w = jax.random.normal(kw_, (Cout, Cin, 3, 3), jnp.float32) / math.sqrt(fan_in)

    w_mat = prepare_weight(w)                 # one-time weight prep (hoisted)
    out = conv_relu_forward(x, w_mat, Cout)
    out = jax.block_until_ready(out)

    assert out.shape == (N, Cout, H, W), out.shape
    assert bool(jnp.all(jnp.isfinite(out)))

    # Reference built from the same bf16-cast operands (kernel accumulates in f32), so the
    # comparison isolates kernel correctness from bf16 input quantization.
    xq = x.astype(jnp.bfloat16).astype(jnp.float32)
    wq = w.astype(jnp.bfloat16).astype(jnp.float32)
    ref = jnp.maximum(
        jax.lax.conv_general_dilated(
            xq, wq, window_strides=(1, 1), padding=((1, 1), (1, 1)),
            dimension_numbers=("NCHW", "OIHW", "NCHW"),
            precision=jax.lax.Precision.HIGHEST),
        0.0)
    max_err = float(jnp.max(jnp.abs(out - ref)))
    assert max_err < 2e-2, max_err

    print("KERNEL_OK")
</pallas_src>

<mosaic_0001>
module attributes {stable_mosaic.version = 11 : i64} {
  func.func @kernel(%arg0: i32, %arg1: i32, %arg2: i32, %arg3: memref<1x1x182x4xbf16, #tpu.memory_space<vmem>>, %arg4: memref<9x4x128xbf16, #tpu.memory_space<vmem>>, %arg5: memref<1x1x144x128xf32, #tpu.memory_space<vmem>>) attributes {dimension_semantics = [#tpu.dimension_semantics<parallel>, #tpu.dimension_semantics<parallel>, #tpu.dimension_semantics<parallel>], iteration_bounds = array<i64: 2, 2, 1>, scalar_prefetch = 0 : i64, scratch_operands = 0 : i64, tpu.core_type = #tpu.core_type<tc>, window_params = [{transform_indices = @transform_0, window_bounds = array<i64: 1, 1, 182, 4>}, {transform_indices = @transform_1, window_bounds = array<i64: 9, 4, 128>}, {transform_indices = @transform_2, window_bounds = array<i64: 1, 1, 144, 128>}]} {
    %cst = arith.constant 0.000000e+00 : f32
    %0 = vector.broadcast %cst : f32 to vector<144x128xf32>
    %c0 = arith.constant 0 : index
    %c0_0 = arith.constant 0 : index
    %c0_1 = arith.constant 0 : index
    %c0_2 = arith.constant 0 : index
    %1 = vector.load %arg3[%c0, %c0_0, %c0_1, %c0_2] : memref<1x1x182x4xbf16, #tpu.memory_space<vmem>>, vector<1x1x144x4xbf16>
    %2 = vector.shape_cast %1 : vector<1x1x144x4xbf16> to vector<144x4xbf16>
    %c0_3 = arith.constant 0 : index
    %c0_4 = arith.constant 0 : index
    %c0_5 = arith.constant 0 : index
    %3 = vector.load %arg4[%c0_3, %c0_4, %c0_5] : memref<9x4x128xbf16, #tpu.memory_space<vmem>>, vector<1x4x128xbf16>
    %4 = vector.shape_cast %3 : vector<1x4x128xbf16> to vector<4x128xbf16>
    %cst_6 = arith.constant dense<0.000000e+00> : vector<144x128xf32>
    %5 = tpu.matmul %2, %4, %cst_6 {dimension_numbers = #tpu.dot_dimension_numbers<[1], [0], [0], [1], [0, 0, 1, 1], [], []>} : vector<144x4xbf16>, vector<4x128xbf16>, vector<144x128xf32> -> vector<144x128xf32>
    %6 = arith.addf %0, %5 : vector<144x128xf32>
    %c0_7 = arith.constant 0 : index
    %c0_8 = arith.constant 0 : index
    %c1 = arith.constant 1 : index
    %c0_9 = arith.constant 0 : index
    %7 = vector.load %arg3[%c0_7, %c0_8, %c1, %c0_9] : memref<1x1x182x4xbf16, #tpu.memory_space<vmem>>, vector<1x1x144x4xbf16>
    %8 = vector.shape_cast %7 : vector<1x1x144x4xbf16> to vector<144x4xbf16>
    %c1_10 = arith.constant 1 : index
    %c0_11 = arith.constant 0 : index
    %c0_12 = arith.constant 0 : index
    %9 = vector.load %arg4[%c1_10, %c0_11, %c0_12] : memref<9x4x128xbf16, #tpu.memory_space<vmem>>, vector<1x4x128xbf16>
    %10 = vector.shape_cast %9 : vector<1x4x128xbf16> to vector<4x128xbf16>
    %cst_13 = arith.constant dense<0.000000e+00> : vector<144x128xf32>
    %11 = tpu.matmul %8, %10, %cst_13 {dimension_numbers = #tpu.dot_dimension_numbers<[1], [0], [0], [1], [0, 0, 1, 1], [], []>} : vector<144x4xbf16>, vector<4x128xbf16>, vector<144x128xf32> -> vector<144x128xf32>
    %12 = arith.addf %6, %11 : vector<144x128xf32>
    %c0_14 = arith.constant 0 : index
    %c0_15 = arith.constant 0 : index
    %c2 = arith.constant 2 : index
    %c0_16 = arith.constant 0 : index
    %13 = vector.load %arg3[%c0_14, %c0_15, %c2, %c0_16] : memref<1x1x182x4xbf16, #tpu.memory_space<vmem>>, vector<1x1x144x4xbf16>
    %14 = vector.shape_cast %13 : vector<1x1x144x4xbf16> to vector<144x4xbf16>
    %c2_17 = arith.constant 2 : index
    %c0_18 = arith.constant 0 : index
    %c0_19 = arith.constant 0 : index
    %15 = vector.load %arg4[%c2_17, %c0_18, %c0_19] : memref<9x4x128xbf16, #tpu.memory_space<vmem>>, vector<1x4x128xbf16>
    %16 = vector.shape_cast %15 : vector<1x4x128xbf16> to vector<4x128xbf16>
    %cst_20 = arith.constant dense<0.000000e+00> : vector<144x128xf32>
    %17 = tpu.matmul %14, %16, %cst_20 {dimension_numbers = #tpu.dot_dimension_numbers<[1], [0], [0], [1], [0, 0, 1, 1], [], []>} : vector<144x4xbf16>, vector<4x128xbf16>, vector<144x128xf32> -> vector<144x128xf32>
    %18 = arith.addf %12, %17 : vector<144x128xf32>
    %c0_21 = arith.constant 0 : index
    %c0_22 = arith.constant 0 : index
    %c18 = arith.constant 18 : index
    %c0_23 = arith.constant 0 : index
    %19 = vector.load %arg3[%c0_21, %c0_22, %c18, %c0_23] : memref<1x1x182x4xbf16, #tpu.memory_space<vmem>>, vector<1x1x144x4xbf16>
    %20 = vector.shape_cast %19 : vector<1x1x144x4xbf16> to vector<144x4xbf16>
    %c3 = arith.constant 3 : index
    %c0_24 = arith.constant 0 : index
    %c0_25 = arith.constant 0 : index
    %21 = vector.load %arg4[%c3, %c0_24, %c0_25] : memref<9x4x128xbf16, #tpu.memory_space<vmem>>, vector<1x4x128xbf16>
    %22 = vector.shape_cast %21 : vector<1x4x128xbf16> to vector<4x128xbf16>
    %cst_26 = arith.constant dense<0.000000e+00> : vector<144x128xf32>
    %23 = tpu.matmul %20, %22, %cst_26 {dimension_numbers = #tpu.dot_dimension_numbers<[1], [0], [0], [1], [0, 0, 1, 1], [], []>} : vector<144x4xbf16>, vector<4x128xbf16>, vector<144x128xf32> -> vector<144x128xf32>
    %24 = arith.addf %18, %23 : vector<144x128xf32>
    %c0_27 = arith.constant 0 : index
    %c0_28 = arith.constant 0 : index
    %c19 = arith.constant 19 : index
    %c0_29 = arith.constant 0 : index
    %25 = vector.load %arg3[%c0_27, %c0_28, %c19, %c0_29] : memref<1x1x182x4xbf16, #tpu.memory_space<vmem>>, vector<1x1x144x4xbf16>
    %26 = vector.shape_cast %25 : vector<1x1x144x4xbf16> to vector<144x4xbf16>
    %c4 = arith.constant 4 : index
    %c0_30 = arith.constant 0 : index
    %c0_31 = arith.constant 0 : index
    %27 = vector.load %arg4[%c4, %c0_30, %c0_31] : memref<9x4x128xbf16, #tpu.memory_space<vmem>>, vector<1x4x128xbf16>
    %28 = vector.shape_cast %27 : vector<1x4x128xbf16> to vector<4x128xbf16>
    %cst_32 = arith.constant dense<0.000000e+00> : vector<144x128xf32>
    %29 = tpu.matmul %26, %28, %cst_32 {dimension_numbers = #tpu.dot_dimension_numbers<[1], [0], [0], [1], [0, 0, 1, 1], [], []>} : vector<144x4xbf16>, vector<4x128xbf16>, vector<144x128xf32> -> vector<144x128xf32>
    %30 = arith.addf %24, %29 : vector<144x128xf32>
    %c0_33 = arith.constant 0 : index
    %c0_34 = arith.constant 0 : index
    %c20 = arith.constant 20 : index
    %c0_35 = arith.constant 0 : index
    %31 = vector.load %arg3[%c0_33, %c0_34, %c20, %c0_35] : memref<1x1x182x4xbf16, #tpu.memory_space<vmem>>, vector<1x1x144x4xbf16>
    %32 = vector.shape_cast %31 : vector<1x1x144x4xbf16> to vector<144x4xbf16>
    %c5 = arith.constant 5 : index
    %c0_36 = arith.constant 0 : index
    %c0_37 = arith.constant 0 : index
    %33 = vector.load %arg4[%c5, %c0_36, %c0_37] : memref<9x4x128xbf16, #tpu.memory_space<vmem>>, vector<1x4x128xbf16>
    %34 = vector.shape_cast %33 : vector<1x4x128xbf16> to vector<4x128xbf16>
    %cst_38 = arith.constant dense<0.000000e+00> : vector<144x128xf32>
    %35 = tpu.matmul %32, %34, %cst_38 {dimension_numbers = #tpu.dot_dimension_numbers<[1], [0], [0], [1], [0, 0, 1, 1], [], []>} : vector<144x4xbf16>, vector<4x128xbf16>, vector<144x128xf32> -> vector<144x128xf32>
    %36 = arith.addf %30, %35 : vector<144x128xf32>
    %c0_39 = arith.constant 0 : index
    %c0_40 = arith.constant 0 : index
    %c36 = arith.constant 36 : index
    %c0_41 = arith.constant 0 : index
    %37 = vector.load %arg3[%c0_39, %c0_40, %c36, %c0_41] : memref<1x1x182x4xbf16, #tpu.memory_space<vmem>>, vector<1x1x144x4xbf16>
    %38 = vector.shape_cast %37 : vector<1x1x144x4xbf16> to vector<144x4xbf16>
    %c6 = arith.constant 6 : index
    %c0_42 = arith.constant 0 : index
    %c0_43 = arith.constant 0 : index
    %39 = vector.load %arg4[%c6, %c0_42, %c0_43] : memref<9x4x128xbf16, #tpu.memory_space<vmem>>, vector<1x4x128xbf16>
    %40 = vector.shape_cast %39 : vector<1x4x128xbf16> to vector<4x128xbf16>
    %cst_44 = arith.constant dense<0.000000e+00> : vector<144x128xf32>
    %41 = tpu.matmul %38, %40, %cst_44 {dimension_numbers = #tpu.dot_dimension_numbers<[1], [0], [0], [1], [0, 0, 1, 1], [], []>} : vector<144x4xbf16>, vector<4x128xbf16>, vector<144x128xf32> -> vector<144x128xf32>
    %42 = arith.addf %36, %41 : vector<144x128xf32>
    %c0_45 = arith.constant 0 : index
    %c0_46 = arith.constant 0 : index
    %c37 = arith.constant 37 : index
    %c0_47 = arith.constant 0 : index
    %43 = vector.load %arg3[%c0_45, %c0_46, %c37, %c0_47] : memref<1x1x182x4xbf16, #tpu.memory_space<vmem>>, vector<1x1x144x4xbf16>
    %44 = vector.shape_cast %43 : vector<1x1x144x4xbf16> to vector<144x4xbf16>
    %c7 = arith.constant 7 : index
    %c0_48 = arith.constant 0 : index
    %c0_49 = arith.constant 0 : index
    %45 = vector.load %arg4[%c7, %c0_48, %c0_49] : memref<9x4x128xbf16, #tpu.memory_space<vmem>>, vector<1x4x128xbf16>
    %46 = vector.shape_cast %45 : vector<1x4x128xbf16> to vector<4x128xbf16>
    %cst_50 = arith.constant dense<0.000000e+00> : vector<144x128xf32>
    %47 = tpu.matmul %44, %46, %cst_50 {dimension_numbers = #tpu.dot_dimension_numbers<[1], [0], [0], [1], [0, 0, 1, 1], [], []>} : vector<144x4xbf16>, vector<4x128xbf16>, vector<144x128xf32> -> vector<144x128xf32>
    %48 = arith.addf %42, %47 : vector<144x128xf32>
    %c0_51 = arith.constant 0 : index
    %c0_52 = arith.constant 0 : index
    %c38 = arith.constant 38 : index
    %c0_53 = arith.constant 0 : index
    %49 = vector.load %arg3[%c0_51, %c0_52, %c38, %c0_53] : memref<1x1x182x4xbf16, #tpu.memory_space<vmem>>, vector<1x1x144x4xbf16>
    %50 = vector.shape_cast %49 : vector<1x1x144x4xbf16> to vector<144x4xbf16>
    %c8 = arith.constant 8 : index
    %c0_54 = arith.constant 0 : index
    %c0_55 = arith.constant 0 : index
    %51 = vector.load %arg4[%c8, %c0_54, %c0_55] : memref<9x4x128xbf16, #tpu.memory_space<vmem>>, vector<1x4x128xbf16>
    %52 = vector.shape_cast %51 : vector<1x4x128xbf16> to vector<4x128xbf16>
    %cst_56 = arith.constant dense<0.000000e+00> : vector<144x128xf32>
    %53 = tpu.matmul %50, %52, %cst_56 {dimension_numbers = #tpu.dot_dimension_numbers<[1], [0], [0], [1], [0, 0, 1, 1], [], []>} : vector<144x4xbf16>, vector<4x128xbf16>, vector<144x128xf32> -> vector<144x128xf32>
    %54 = arith.addf %48, %53 : vector<144x128xf32>
    %cst_57 = arith.constant 0.000000e+00 : f32
    %55 = vector.broadcast %cst_57 : f32 to vector<144x128xf32>
    %56 = arith.maximumf %54, %55 : vector<144x128xf32>
    %c0_58 = arith.constant 0 : index
    %c0_59 = arith.constant 0 : index
    %c0_60 = arith.constant 0 : index
    %c0_61 = arith.constant 0 : index
    %57 = vector.load %arg5[%c0_58, %c0_59, %c0_60, %c0_61] : memref<1x1x144x128xf32, #tpu.memory_space<vmem>>, vector<1x1x144x128xf32>
    %58 = vector.shape_cast %57 : vector<1x1x144x128xf32> to vector<144x128xf32>
    %59 = vector.shape_cast %56 : vector<144x128xf32> to vector<1x1x144x128xf32>
    tpu.vector_store %arg5[%c0_58, %c0_59, %c0_60, %c0_61], %59 {strides = array<i32>} : memref<1x1x144x128xf32, #tpu.memory_space<vmem>>, vector<1x1x144x128xf32>,
    return
  }
  func.func @transform_0(%arg0: i32, %arg1: i32, %arg2: i32) -> (i32, i32, i32, i32) {
    %c0_i32 = arith.constant 0 : i32
    %c0_i32_0 = arith.constant 0 : i32
    %c0_i32_1 = arith.constant 0 : i32
    return %arg0, %arg1, %c0_i32, %c0_i32_0 : i32, i32, i32, i32
  }
  func.func @transform_1(%arg0: i32, %arg1: i32, %arg2: i32) -> (i32, i32, i32) {
    %c0_i32 = arith.constant 0 : i32
    %c0_i32_0 = arith.constant 0 : i32
    %c0_i32_1 = arith.constant 0 : i32
    return %c0_i32, %c0_i32_0, %arg2 : i32, i32, i32
  }
  func.func @transform_2(%arg0: i32, %arg1: i32, %arg2: i32) -> (i32, i32, i32, i32) {
    %c0_i32 = arith.constant 0 : i32
    %c0_i32_0 = arith.constant 0 : i32
    return %arg0, %arg1, %c0_i32, %arg2 : i32, i32, i32, i32
  }
}

</mosaic_0001>

<llo_original>
// kernel: conv_relu_forward.1
$region0: #{conv_relu_forward.1}
  #allocation0 [shape = 'u32[]', space=smem, size = 0x4, offset = 0x4, fixed_abs, tag = 'smem constant byte address 0x4 - core index']
  #allocation1 [shape = 'u32[144,128]{1,0:T(1,128)}', space=vmem, size = 0x12000, scoped, tag = 'internal scratch']
  %s0 = inlined_call_operand.vmem [shape: bf16[2,2,182,4], index: 0, kind: input, shape index: {}]
  %s1 = inlined_call_operand.vmem [shape: bf16[9,4,128], index: 1, kind: input, shape index: {}]
  %s2 = inlined_call_operand.vmem [shape: f32[2,2,144,128], index: 2, kind: output, shape index: {}]
  %s3 = sld [smem:[#allocation0]]
  $region41: #{conv_relu_forward.1} parent=0
    _
  %s5 = ssub.s32 1, %s3
  %s6 = scalar_select 0, %s5, %s3
  loop: start=0, step=1, limit=6
  $region2: #{conv_relu_forward.1} parent=0 // loop_pre_header
    _
  $region3: #{conv_relu_forward.1} parent=0 // loop_header
    %s8 = sphi 0, %s12
    %p9 = scmp.ge.s32.totalorder %s8, 6
    %s15 = sphi 0, %s34
    %s16 = sphi 0, %s30
    %s17 = sphi 0, %s26
    %s18 = sphi 0, %s15
    %s19 = sphi 0, %s16
    %s20 = sphi 0, %s17
    %s21 = sphi 0, %s18
    %s22 = sphi 0, %s19
    %s23 = sphi 0, %s20
    %s39 = sphi 0, %s41
    %s42 = sphi 0, %s39
    %s43 = sphi 0, %s42
    %s59 = sphi 0, %s43
    %s65 = sphi 0, %s67
    %s68 = sphi 0, %s65
    %s69 = sphi 0, %s68
    %s85 = sphi 0, %s69
    %s95 = sphi 0, %s97
    %s98 = sphi 0, %s95
    %s99 = sphi 0, %s98
    %s115 = sphi 0, %s99
  $region4: #{conv_relu_forward.1} parent=0 // loop_header_branch
    %11 = sbr.rel (%p9) target = $region8
  $region5: #{conv_relu_forward.1} parent=0 // loop_body
    %s13 = ssub.s32 %s8, 1
    %s14 = ssub.s32 %s8, 2
    %s24 = sadd.s32 1, %s17
    %p25 = scmp.ge.s32.totalorder %s24, 1
    %s26 = scalar_select %p25, 0, %s24
    %s27 = sadd.s32 1, %s16
    %s28 = scalar_select %p25, %s27, %s16
    %p29 = scmp.ge.s32.totalorder %s28, 2
    %s30 = scalar_select %p29, 0, %s28
    %s31 = sadd.s32 1, %s15
    %s32 = scalar_select %p29, %s31, %s15
    %p33 = scmp.ge.s32.totalorder %s32, 2
    %s34 = scalar_select %p33, 0, %s32
    %s35 = ssub.s32 %s15, %s34
    %s36 = ssub.s32 %s16, %s30
    %s37 = sor.u32 %s35, %s36
    %p38 = scmp.eq.s32.totalorder %s37, 0
    %s40 = sadd.s32 %s39, 1
    %s41 = scalar_select %p38, %s39, %s40
    %p44 = pneg %p38
    %p45 = scmp.eq.s32.totalorder %s8, 3
    %p46 = por %p44, %p45
    %p47 = scmp.ne.s32.totalorder %s39, %s42
    %p48 = scmp.eq.s32.totalorder %s8, 0
    %p49 = por %p47, %p48
    %p50 = scmp.ne.s32.totalorder %s39, %s42
    %p51 = scmp.eq.s32.totalorder %s13, 3
    %p52 = por %p50, %p51
    %p53 = scmp.ne.s32.totalorder %s42, %s43
    %p54 = scmp.eq.s32.totalorder %s13, 0
    %p55 = por %p53, %p54
    %p56 = scmp.ne.s32.totalorder %s42, %s43
    %p57 = scmp.eq.s32.totalorder %s14, 3
    %p58 = por %p56, %p57
    %p60 = scmp.ne.s32.totalorder %s43, %s59
    %p61 = scmp.eq.s32.totalorder %s14, 0
    %p62 = por %p60, %p61
    %s63 = ssub.s32 %s17, %s26
    %p64 = scmp.eq.s32.totalorder %s63, 0
    %s66 = sadd.s32 %s65, 1
    %s67 = scalar_select %p64, %s65, %s66
    %p70 = pneg %p64
    %p71 = scmp.eq.s32.totalorder %s8, 3
    %p72 = por %p70, %p71
    %p73 = scmp.ne.s32.totalorder %s65, %s68
    %p74 = scmp.eq.s32.totalorder %s8, 0
    %p75 = por %p73, %p74
    %p76 = scmp.ne.s32.totalorder %s65, %s68
    %p77 = scmp.eq.s32.totalorder %s13, 3
    %p78 = por %p76, %p77
    %p79 = scmp.ne.s32.totalorder %s68, %s69
    %p80 = scmp.eq.s32.totalorder %s13, 0
    %p81 = por %p79, %p80
    %p82 = scmp.ne.s32.totalorder %s68, %s69
    %p83 = scmp.eq.s32.totalorder %s14, 3
    %p84 = por %p82, %p83
    %p86 = scmp.ne.s32.totalorder %s69, %s85
    %p87 = scmp.eq.s32.totalorder %s14, 0
    %p88 = por %p86, %p87
    %s89 = ssub.s32 %s15, %s34
    %s90 = ssub.s32 %s16, %s30
    %s91 = sor.u32 %s89, %s90
    %s92 = ssub.s32 %s17, %s26
    %s93 = sor.u32 %s91, %s92
    %p94 = scmp.eq.s32.totalorder %s93, 0
    %s96 = sadd.s32 %s95, 1
    %s97 = scalar_select %p94, %s95, %s96
    %p100 = pneg %p94
    %p101 = scmp.eq.s32.totalorder %s8, 3
    %p102 = por %p100, %p101
    %p103 = scmp.ne.s32.totalorder %s95, %s98
    %p104 = scmp.eq.s32.totalorder %s8, 0
    %p105 = por %p103, %p104
    %p106 = scmp.ne.s32.totalorder %s95, %s98
    %p107 = scmp.eq.s32.totalorder %s13, 3
    %p108 = por %p106, %p107
    %p109 = scmp.ne.s32.totalorder %s98, %s99
    %p110 = scmp.eq.s32.totalorder %s13, 0
    %p111 = por %p109, %p110
    %p112 = scmp.ne.s32.totalorder %s98, %s99
    %p113 = scmp.eq.s32.totalorder %s14, 3
    %p114 = por %p112, %p113
    %p116 = scmp.ne.s32.totalorder %s99, %s115
    %p117 = scmp.eq.s32.totalorder %s14, 0
    %p118 = por %p116, %p117
    %p119 = scmp.le.s32.totalorder 1, %s8
    %p120 = scmp.lt.s32.totalorder %s8, 5
    %p121 = pnand %p119, %p120
    %p122 = pneg %p121
    // Predicated region
    $region9: #{conv_relu_forward.1} parent=5 // pred_check
      _
    $region10: #{conv_relu_forward.1} parent=5 // pred_check_branch
      %124 = sbr.rel (%p121) target = $region12
    $region11: #{conv_relu_forward.1} parent=5 // pred_region
      %s125 = ssub.s32 %s8, 1
      // Predicated region
      $region13: #{conv_relu_forward.1} parent=11 // pred_check
        %p126 = pneg %p81
      $region14: #{conv_relu_forward.1} parent=11 // pred_check_branch
        %128 = sbr.rel (%p126) target = $region16
      $region15: #{conv_relu_forward.1} parent=11 // pred_region
        %p129 = scmp.lt.s32.totalorder %s20, 0
        %s130 = scalar_select %p129, %s20, 0
        %s131 = smul.addr %s130, 2
        %s132 = scalar_lea.vmem %s1, %s131
      $region16: #{conv_relu_forward.1} parent=11 // pred_fallthru
        _
    $region12: #{conv_relu_forward.1} parent=5 // pred_fallthru
      _
    %p133 = scmp.lt.s32.totalorder %s8, 4
    // Predicated region
    $region17: #{conv_relu_forward.1} parent=5 // pred_check
      %p134 = pneg %p133
    $region18: #{conv_relu_forward.1} parent=5 // pred_check_branch
      %136 = sbr.rel (%p134) target = $region20
    $region19: #{conv_relu_forward.1} parent=5 // pred_region
      // Predicated region
      $region21: #{conv_relu_forward.1} parent=19 // pred_check
        %p137 = pneg %p49
      $region22: #{conv_relu_forward.1} parent=19 // pred_check_branch
        %139 = sbr.rel (%p137) target = $region24
      $region23: #{conv_relu_forward.1} parent=19 // pred_region
        %p140 = scmp.lt.s32.totalorder %s15, 1
        %s141 = scalar_select %p140, %s15, 1
        %p142 = scmp.lt.s32.totalorder %s16, 1
        %s143 = scalar_select %p142, %s16, 1
        %s144 = smul.addr %s143, 23
        %s145 = smul.addr %s141, 46
        %s146 = sadd.s32 %s144, %s145
        %s147 = smul.addr %s146, 4
        %s148 = scalar_lea.vmem %s0, %s147
      $region24: #{conv_relu_forward.1} parent=19 // pred_fallthru
        _
    $region20: #{conv_relu_forward.1} parent=5 // pred_fallthru
      _
    %p149 = scmp.le.s32.totalorder 1, %s8
    %p150 = scmp.lt.s32.totalorder %s8, 5
    %p151 = pnand %p149, %p150
    %p152 = pneg %p151
    // Predicated region
    $region25: #{conv_relu_forward.1} parent=5 // pred_check
      _
    $region26: #{conv_relu_forward.1} parent=5 // pred_check_branch
      %154 = sbr.rel (%p151) target = $region28
    $region27: #{conv_relu_forward.1} parent=5 // pred_region
      %s155 = ssub.s32 %s8, 1
      %p156 = scmp.lt.s32.totalorder %s18, 1
      %s157 = scalar_select %p156, %s18, 1
      %p158 = scmp.lt.s32.totalorder %s19, 1
      %s159 = scalar_select %p158, %s19, 1
      %s160 = smul.addr %s159, 23
      %s161 = smul.addr %s157, 46
      %s162 = sadd.s32 %s160, %s161
      %s163 = smul.addr %s162, 4
      %s164 = scalar_lea.vmem %s0, %s163
      %p165 = pneg %p55
      %p166 = pneg %p52
      %p167 = scmp.lt.s32.totalorder %s20, 0
      %s168 = scalar_select %p167, %s20, 0
      %s169 = smul.addr %s168, 2
      %s170 = scalar_lea.vmem %s1, %s169
      %p171 = pneg %p81
      %p172 = pneg %p78
      %p173 = pneg %p111
      %p174 = pneg %p108
      %p175 = scmp.lt.s32.totalorder %s18, 1
      %s176 = scalar_select %p175, %s18, 1
      %p177 = scmp.lt.s32.totalorder %s19, 1
      %s178 = scalar_select %p177, %s19, 1
      %p179 = scmp.lt.s32.totalorder %s20, 0
      %s180 = scalar_select %p179, %s20, 0
      %s181 = smul.addr %s178, 18
      %s182 = sadd.s32 %s180, %s181
      %s183 = smul.addr %s176, 36
      %s184 = sadd.s32 %s182, %s183
      %s185 = smul.addr %s184, 8
      %s186 = scalar_lea.vmem %s2, %s185
      %p187 = scmp.lt.s32.totalorder %s18, 1
      %s188 = scalar_select %p187, %s18, 1
      %p189 = scmp.lt.s32.totalorder %s19, 1
      %s190 = scalar_select %p189, %s19, 1
      %s191 = smul.addr %s190, 23
      %s192 = smul.addr %s188, 46
      %s193 = sadd.s32 %s191, %s192
      %s194 = smul.addr %s193, 4
      %s195 = scalar_lea.vmem %s0, %s194
      %p196 = scmp.lt.s32.totalorder %s20, 0
      %s197 = scalar_select %p196, %s20, 0
      %s198 = smul.addr %s197, 2
      %s199 = scalar_lea.vmem %s1, %s198
      %p200 = scmp.lt.s32.totalorder %s18, 1
      %s201 = scalar_select %p200, %s18, 1
      %p202 = scmp.lt.s32.totalorder %s19, 1
      %s203 = scalar_select %p202, %s19, 1
      %p204 = scmp.lt.s32.totalorder %s20, 0
      %s205 = scalar_select %p204, %s20, 0
      %s206 = smul.addr %s203, 18
      %s207 = sadd.s32 %s205, %s206
      %s208 = smul.addr %s201, 36
      %s209 = sadd.s32 %s207, %s208
      %s210 = smul.addr %s209, 8
      %s211 = scalar_lea.vmem %s2, %s210
      %v213 = vld [vmem:[%s195] sm:$0xf]
      %v214 = vld [vmem:[%s195 + $0x4] sm:$0xf]
      %v215 = vld [vmem:[%s195 + $0x8] sm:$0xf]
      %v216 = vld [vmem:[%s195 + $0xc] sm:$0xf]
      %v217 = vld [vmem:[%s195 + $0x10] sm:$0xf]
      %v218 = vld [vmem:[%s195 + $0x14] sm:$0xf]
      %v219 = vld [vmem:[%s195 + $0x18] sm:$0xf]
      %v220 = vld [vmem:[%s195 + $0x1c] sm:$0xf]
      %v221 = vld [vmem:[%s195 + $0x20] sm:$0xf]
      %v222 = vld [vmem:[%s195 + $0x24] sm:$0xf]
      %v223 = vld [vmem:[%s195 + $0x28] sm:$0xf]
      %v224 = vld [vmem:[%s195 + $0x2c] sm:$0xf]
      %v225 = vld [vmem:[%s195 + $0x30] sm:$0xf]
      %v226 = vld [vmem:[%s195 + $0x34] sm:$0xf]
      %v227 = vld [vmem:[%s195 + $0x38] sm:$0xf]
      %v228 = vld [vmem:[%s195 + $0x3c] sm:$0xf]
      %v229 = vld [vmem:[%s195 + $0x40] sm:$0xf]
      %v230 = vld [vmem:[%s195 + $0x44] sm:$0xf]
      %v231 = vld [vmem:[%s199] sm:$0x3]
      %v232 = vld [vmem:[%s195 + $0x48] sm:$0x1]
      %s233 = scalar_lea.vmem %s199, 2
      %v234 = vld [vmem:[%s233] sm:$0x3]
      %v254 = vunpack.c.l.b16 %v213
      %v255 = vunpack.c.l.b16 %v214
      %v256 = vunpack.c.l.b16 %v215
      %v257 = vunpack.c.l.b16 %v216
      %v258 = vunpack.c.l.b16 %v217
      %v259 = vunpack.c.l.b16 %v218
      %v260 = vunpack.c.l.b16 %v219
      %v261 = vunpack.c.l.b16 %v220
      %v262 = vunpack.c.l.b16 %v221
      %v263 = vunpack.c.l.b16 %v222
      %v264 = vunpack.c.l.b16 %v223
      %v265 = vunpack.c.l.b16 %v224
      %v266 = vunpack.c.l.b16 %v225
      %v267 = vunpack.c.l.b16 %v226
      %v268 = vunpack.c.l.b16 %v227
      %v269 = vunpack.c.l.b16 %v228
      %v270 = vunpack.c.l.b16 %v229
      %v271 = vunpack.c.l.b16 %v230
      %v272 = vunpack.c.l.b16 %v232
      %v273 = vpack.c.b16 %v255, %v254
      %v274 = vpack.c.b16 %v257, %v256
      %v275 = vpack.c.b16 %v259, %v258
      %v276 = vpack.c.b16 %v261, %v260
      %v277 = vpack.c.b16 %v263, %v262
      %v278 = vpack.c.b16 %v265, %v264
      %v279 = vpack.c.b16 %v267, %v266
      %v280 = vpack.c.b16 %v269, %v268
      %v281 = vpack.c.b16 %v271, %v270
      %v282 = vpack.c.b16 %v272, %v272
      %vm283 = vsmask.f32 7424
      %v285 = vshrl.u32 %v273, 16
      %v287 = vshll.u32 %v273, 16
      %v289 = vrot.slane %v287, 1
      %v290 = vor.u32 %v285, %v289
      %v292 = vshll.u32 %v274, 16
      %v294 = vrot.slane %v292, 1
      %v295 = vsel %vm283, %v290, %v294
      %v296 = vshrl.u32 %v274, 16
      %v298 = vor.u32 %v296, %v294
      %v300 = vshll.u32 %v275, 16
      %v302 = vrot.slane %v300, 1
      %v303 = vsel %vm283, %v298, %v302
      %v304 = vshrl.u32 %v275, 16
      %v306 = vor.u32 %v304, %v302
      %v308 = vshll.u32 %v276, 16
      %v310 = vrot.slane %v308, 1
      %v311 = vsel %vm283, %v306, %v310
      %v312 = vshrl.u32 %v276, 16
      %v314 = vor.u32 %v312, %v310
      %v316 = vshll.u32 %v277, 16
      %v318 = vrot.slane %v316, 1
      %v319 = vsel %vm283, %v314, %v318
      %v320 = vshrl.u32 %v277, 16
      %v322 = vor.u32 %v320, %v318
      %v324 = vshll.u32 %v278, 16
      %v326 = vrot.slane %v324, 1
      %v327 = vsel %vm283, %v322, %v326
      %v328 = vshrl.u32 %v278, 16
      %v330 = vor.u32 %v328, %v326
      %v332 = vshll.u32 %v279, 16
      %v334 = vrot.slane %v332, 1
      %v335 = vsel %vm283, %v330, %v334
      %v336 = vshrl.u32 %v279, 16
      %v338 = vor.u32 %v336, %v334
      %v340 = vshll.u32 %v280, 16
      %v342 = vrot.slane %v340, 1
      %v343 = vsel %vm283, %v338, %v342
      %v344 = vshrl.u32 %v280, 16
      %v346 = vor.u32 %v344, %v342
      %v348 = vshll.u32 %v281, 16
      %v350 = vrot.slane %v348, 1
      %v351 = vsel %vm283, %v346, %v350
      %v352 = vshrl.u32 %v281, 16
      %v354 = vor.u32 %v352, %v350
      %v356 = vshll.u32 %v282, 16
      %v358 = vrot.slane %v356, 1
      %v359 = vsel %vm283, %v354, %v358
      %vm360 = vcmask 31744
      %v362 = vsel %vm360, %v295, 0
      %v365 = vsel %vm360, %v303, 0
      %v368 = vsel %vm360, %v311, 0
      %v371 = vsel %vm360, %v319, 0
      %v374 = vsel %vm360, %v327, 0
      %v377 = vsel %vm360, %v335, 0
      %v380 = vsel %vm360, %v343, 0
      %v383 = vsel %vm360, %v351, 0
      %v386 = vsel %vm360, %v359, 0
      %vm388 = vcmask 1041408
      %v390 = vsel %vm388, %v234, 0
      %392 = vmatprep.subr.bf16.mxu0 0
      %393 = vmatpush1.bf16.msra.mxu0 %v390
      %394 = vmatprep.subr.bf16.mxu0 0
      %395 = vmatpush1.bf16.msra.mxu0 0
      %396 = vmatprep.subr.bf16.mxu0 0
      %397 = vmatpush1.bf16.msra.mxu0 0
      %398 = vmatprep.subr.bf16.mxu0 0
      %399 = vmatpush1.bf16.msra.mxu0 0
      %400 = vmatprep.subr.bf16.mxu0 0
      %401 = vmatpush1.bf16.msra.mxu0 0
      %402 = vmatprep.subr.bf16.mxu0 0
      %403 = vmatpush1.bf16.msra.mxu0 0
      %404 = vmatprep.subr.bf16.mxu0 0
      %405 = vmatpush1.bf16.msra.mxu0 0
      %406 = vmatprep.subr.bf16.mxu0 0
      %407 = vmatpush1.bf16.msra.mxu0 0
      %408 = vmatprep.subr.bf16.mxu0 0
      %409 = vmatpush1.bf16.msra.mxu0 0
      %410 = vmatprep.subr.bf16.mxu0 0
      %411 = vmatpush1.bf16.msra.mxu0 0
      %412 = vmatprep.subr.bf16.mxu0 0
      %413 = vmatpush1.bf16.msra.mxu0 0
      %414 = vmatprep.subr.bf16.mxu0 0
      %415 = vmatpush1.bf16.msra.mxu0 0
      %416 = vmatprep.subr.bf16.mxu0 0
      %417 = vmatpush1.bf16.msra.mxu0 0
      %418 = vmatprep.subr.bf16.mxu0 0
      %419 = vmatpush1.bf16.msra.mxu0 0
      %420 = vmatprep.subr.bf16.mxu0 0
      %421 = vmatpush1.bf16.msra.mxu0 0
      %422 = vmatprep.subr.bf16.mxu0 0
      %423 = vmatpush1.bf16.msra.mxu0 0
      %424 = vmatprep.mubr.bf16.mxu0 0
      %425 = vmatmul.mubr.bf16.gmra.mrb[0].mxu0 %v362
      %v426 = vpop.f32.mrb[0].mxu0
      %v427 = vadd.f32 0.0, %v426
      %v428 = vpop.f32.mrb[0].mxu0
      %v429 = vpop.f32.mrb[0].mxu0
      %v430 = vadd.f32 0.0, %v429
      %v431 = vpop.f32.mrb[0].mxu0
      %432 = vmatprep.mubr.bf16.mxu0 0
      %433 = vmatmul.mubr.bf16.gmra.mrb[0].mxu0 %v365
      %v434 = vpop.f32.mrb[0].mxu0
      %v435 = vadd.f32 0.0, %v434
      %v436 = vpop.f32.mrb[0].mxu0
      %v437 = vpop.f32.mrb[0].mxu0
      %v438 = vadd.f32 0.0, %v437
      %v439 = vpop.f32.mrb[0].mxu0
      %440 = vmatprep.mubr.bf16.mxu0 0
      %441 = vmatmul.mubr.bf16.gmra.mrb[0].mxu0 %v368
      %v442 = vpop.f32.mrb[0].mxu0
      %v443 = vadd.f32 0.0, %v442
      %v444 = vpop.f32.mrb[0].mxu0
      %v445 = vpop.f32.mrb[0].mxu0
      %v446 = vadd.f32 0.0, %v445
      %v447 = vpop.f32.mrb[0].mxu0
      %448 = vmatprep.mubr.bf16.mxu0 0
      %449 = vmatmul.mubr.bf16.gmra.mrb[0].mxu0 %v371
      %v450 = vpop.f32.mrb[0].mxu0
      %v451 = vadd.f32 0.0, %v450
      %v452 = vpop.f32.mrb[0].mxu0
      %v453 = vpop.f32.mrb[0].mxu0
      %v454 = vadd.f32 0.0, %v453
      %v455 = vpop.f32.mrb[0].mxu0
      %456 = vmatprep.mubr.bf16.mxu0 0
      %457 = vmatmul.mubr.bf16.gmra.mrb[0].mxu0 %v374
      %v458 = vpop.f32.mrb[0].mxu0
      %v459 = vadd.f32 0.0, %v458
      %v460 = vpop.f32.mrb[0].mxu0
      %v461 = vpop.f32.mrb[0].mxu0
      %v462 = vadd.f32 0.0, %v461
      %v463 = vpop.f32.mrb[0].mxu0
      %464 = vmatprep.mubr.bf16.mxu0 0
      %465 = vmatmul.mubr.bf16.gmra.mrb[0].mxu0 %v377
      %v466 = vpop.f32.mrb[0].mxu0
      %v467 = vadd.f32 0.0, %v466
      %v468 = vpop.f32.mrb[0].mxu0
      %v469 = vpop.f32.mrb[0].mxu0
      %v470 = vadd.f32 0.0, %v469
      %v471 = vpop.f32.mrb[0].mxu0
      %472 = vmatprep.mubr.bf16.mxu0 0
      %473 = vmatmul.mubr.bf16.gmra.mrb[0].mxu0 %v380
      %v474 = vpop.f32.mrb[0].mxu0
      %v475 = vadd.f32 0.0, %v474
      %v476 = vpop.f32.mrb[0].mxu0
      %v477 = vpop.f32.mrb[0].mxu0
      %v478 = vadd.f32 0.0, %v477
      %v479 = vpop.f32.mrb[0].mxu0
      %480 = vmatprep.mubr.bf16.mxu0 0
      %481 = vmatmul.mubr.bf16.gmra.mrb[0].mxu0 %v383
      %v482 = vpop.f32.mrb[0].mxu0
      %v483 = vadd.f32 0.0, %v482
      %v484 = vpop.f32.mrb[0].mxu0
      %v485 = vpop.f32.mrb[0].mxu0
      %v486 = vadd.f32 0.0, %v485
      %v487 = vpop.f32.mrb[0].mxu0
      %488 = vmatprep.mubr.bf16.mxu0 0
      %489 = vmatmul.mubr.bf16.gmra.mrb[0].mxu0 %v386
      %v490 = vpop.f32.mrb[0].mxu0
      %v491 = vadd.f32 0.0, %v490
      %v492 = vpop.f32.mrb[0].mxu0
      %v493 = vpop.f32.mrb[0].mxu0
      %v494 = vadd.f32 0.0, %v493
      %v495 = vpop.f32.mrb[0].mxu0
      %496 = vdwg.mxu0
      %v497 = vsel %vm360, %v273, 0
      %v499 = vsel %vm360, %v274, 0
      %v501 = vsel %vm360, %v275, 0
      %v503 = vsel %vm360, %v276, 0
      %v505 = vsel %vm360, %v277, 0
      %v507 = vsel %vm360, %v278, 0
      %v509 = vsel %vm360, %v279, 0
      %v511 = vsel %vm360, %v280, 0
      %v513 = vsel %vm360, %v281, 0
      %v516 = vsel %vm388, %v231, 0
      %518 = vmatprep.subr.bf16.mxu0 0
      %519 = vmatpush1.bf16.msra.mxu0 %v516
      %520 = vmatprep.subr.bf16.mxu0 0
      %521 = vmatpush1.bf16.msra.mxu0 0
      %522 = vmatprep.subr.bf16.mxu0 0
      %523 = vmatpush1.bf16.msra.mxu0 0
      %524 = vmatprep.subr.bf16.mxu0 0
      %525 = vmatpush1.bf16.msra.mxu0 0
      %526 = vmatprep.subr.bf16.mxu0 0
      %527 = vmatpush1.bf16.msra.mxu0 0
      %528 = vmatprep.subr.bf16.mxu0 0
      %529 = vmatpush1.bf16.msra.mxu0 0
      %530 = vmatprep.subr.bf16.mxu0 0
      %531 = vmatpush1.bf16.msra.mxu0 0
      %532 = vmatprep.subr.bf16.mxu0 0
      %533 = vmatpush1.bf16.msra.mxu0 0
      %534 = vmatprep.subr.bf16.mxu0 0
      %535 = vmatpush1.bf16.msra.mxu0 0
      %536 = vmatprep.subr.bf16.mxu0 0
      %537 = vmatpush1.bf16.msra.mxu0 0
      %538 = vmatprep.subr.bf16.mxu0 0
      %539 = vmatpush1.bf16.msra.mxu0 0
      %540 = vmatprep.subr.bf16.mxu0 0
      %541 = vmatpush1.bf16.msra.mxu0 0
      %542 = vmatprep.subr.bf16.mxu0 0
      %543 = vmatpush1.bf16.msra.mxu0 0
      %544 = vmatprep.subr.bf16.mxu0 0
      %545 = vmatpush1.bf16.msra.mxu0 0
      %546 = vmatprep.subr.bf16.mxu0 0
      %547 = vmatpush1.bf16.msra.mxu0 0
      %548 = vmatprep.subr.bf16.mxu0 0
      %549 = vmatpush1.bf16.msra.mxu0 0
      %550 = vmatprep.mubr.bf16.mxu0 0
      %551 = vmatmul.mubr.bf16.gmra.mrb[0].mxu0 %v497
      %v552 = vpop.f32.mrb[0].mxu0
      %v553 = vadd.f32 %v427, %v552
      %v554 = vpop.f32.mrb[0].mxu0
      %v555 = vpop.f32.mrb[0].mxu0
      %v556 = vadd.f32 %v430, %v555
      %v557 = vpop.f32.mrb[0].mxu0
      %558 = vmatprep.mubr.bf16.mxu0 0
      %559 = vmatmul.mubr.bf16.gmra.mrb[0].mxu0 %v499
      %v560 = vpop.f32.mrb[0].mxu0
      %v561 = vadd.f32 %v435, %v560
      %v562 = vpop.f32.mrb[0].mxu0
      %v563 = vpop.f32.mrb[0].mxu0
      %v564 = vadd.f32 %v438, %v563
      %v565 = vpop.f32.mrb[0].mxu0
      %566 = vmatprep.mubr.bf16.mxu0 0
      %567 = vmatmul.mubr.bf16.gmra.mrb[0].mxu0 %v501
      %v568 = vpop.f32.mrb[0].mxu0
      %v569 = vadd.f32 %v443, %v568
      %v570 = vpop.f32.mrb[0].mxu0
      %v571 = vpop.f32.mrb[0].mxu0
      %v572 = vadd.f32 %v446, %v571
      %v573 = vpop.f32.mrb[0].mxu0
      %574 = vmatprep.mubr.bf16.mxu0 0
      %575 = vmatmul.mubr.bf16.gmra.mrb[0].mxu0 %v503
      %v576 = vpop.f32.mrb[0].mxu0
      %v577 = vadd.f32 %v451, %v576
      %v578 = vpop.f32.mrb[0].mxu0
      %v579 = vpop.f32.mrb[0].mxu0
      %v580 = vadd.f32 %v454, %v579
      %v581 = vpop.f32.mrb[0].mxu0
      %582 = vmatprep.mubr.bf16.mxu0 0
      %583 = vmatmul.mubr.bf16.gmra.mrb[0].mxu0 %v505
      %v584 = vpop.f32.mrb[0].mxu0
      %v585 = vadd.f32 %v459, %v584
      %v586 = vpop.f32.mrb[0].mxu0
      %v587 = vpop.f32.mrb[0].mxu0
      %v588 = vadd.f32 %v462, %v587
      %v589 = vpop.f32.mrb[0].mxu0
      %590 = vmatprep.mubr.bf16.mxu0 0
      %591 = vmatmul.mubr.bf16.gmra.mrb[0].mxu0 %v507
      %v592 = vpop.f32.mrb[0].mxu0
      %v593 = vadd.f32 %v467, %v592
      %v594 = vpop.f32.mrb[0].mxu0
      %v595 = vpop.f32.mrb[0].mxu0
      %v596 = vadd.f32 %v470, %v595
      %v597 = vpop.f32.mrb[0].mxu0
      %598 = vmatprep.mubr.bf16.mxu0 0
      %599 = vmatmul.mubr.bf16.gmra.mrb[0].mxu0 %v509
      %v600 = vpop.f32.mrb[0].mxu0
      %v601 = vadd.f32 %v475, %v600
      %v602 = vpop.f32.mrb[0].mxu0
      %v603 = vpop.f32.mrb[0].mxu0
      %v604 = vadd.f32 %v478, %v603
      %v605 = vpop.f32.mrb[0].mxu0
      %606 = vmatprep.mubr.bf16.mxu0 0
      %607 = vmatmul.mubr.bf16.gmra.mrb[0].mxu0 %v511
      %v608 = vpop.f32.mrb[0].mxu0
      %v609 = vadd.f32 %v483, %v608
      %v610 = vpop.f32.mrb[0].mxu0
      %v611 = vpop.f32.mrb[0].mxu0
      %v612 = vadd.f32 %v486, %v611
      %v613 = vpop.f32.mrb[0].mxu0
      %614 = vmatprep.mubr.bf16.mxu0 0
      %615 = vmatmul.mubr.bf16.gmra.mrb[0].mxu0 %v513
      %v616 = vpop.f32.mrb[0].mxu0
      %v617 = vadd.f32 %v491, %v616
      %v618 = vpop.f32.mrb[0].mxu0
      %v619 = vpop.f32.mrb[0].mxu0
      %v620 = vadd.f32 %v494, %v619
      %v621 = vpop.f32.mrb[0].mxu0
      %622 = vdwg.mxu0
      %v623 = vld [vmem:[%s195] sm:$0xe]
      %s624 = scalar_lea.vmem %s199, 4
      %v625 = vld [vmem:[%s624] sm:$0x3]
      %v627 = vunpack.c.l.b16 %v623
      %v628 = vpack.c.b16 %v255, %v627
      %vm629 = vcmask 1046528
      %v630 = vrot.slane %v628, 1
      %v631 = vrot.slane %v274, 1
      %v632 = vsel %vm629, %v630, %v631
      %v633 = vrot.slane %v275, 1
      %v634 = vsel %vm629, %v631, %v633
      %v635 = vrot.slane %v276, 1
      %v636 = vsel %vm629, %v633, %v635
      %v637 = vrot.slane %v277, 1
      %v638 = vsel %vm629, %v635, %v637
      %v639 = vrot.slane %v278, 1
      %v640 = vsel %vm629, %v637, %v639
      %v641 = vrot.slane %v279, 1
      %v642 = vsel %vm629, %v639, %v641
      %v643 = vrot.slane %v280, 1
      %v644 = vsel %vm629, %v641, %v643
      %v645 = vrot.slane %v281, 1
      %v646 = vsel %vm629, %v643, %v645
      %v647 = vrot.slane %v282, 1
      %v648 = vsel %vm629, %v645, %v647
      %v650 = vsel %vm360, %v632, 0
      %v653 = vsel %vm360, %v634, 0
      %v656 = vsel %vm360, %v636, 0
      %v659 = vsel %vm360, %v638, 0
      %v662 = vsel %vm360, %v640, 0
      %v665 = vsel %vm360, %v642, 0
      %v668 = vsel %vm360, %v644, 0
      %v671 = vsel %vm360, %v646, 0
      %v674 = vsel %vm360, %v648, 0
      %v677 = vsel %vm388, %v625, 0
      %679 = vmatprep.subr.bf16.mxu0 0
      %680 = vmatpush1.bf16.msra.mxu0 %v677
      %681 = vmatprep.subr.bf16.mxu0 0
      %682 = vmatpush1.bf16.msra.mxu0 0
      %683 = vmatprep.subr.bf16.mxu0 0
      %684 = vmatpush1.bf16.msra.mxu0 0
      %685 = vmatprep.subr.bf16.mxu0 0
      %686 = vmatpush1.bf16.msra.mxu0 0
      %687 = vmatprep.subr.bf16.mxu0 0
      %688 = vmatpush1.bf16.msra.mxu0 0
      %689 = vmatprep.subr.bf16.mxu0 0
      %690 = vmatpush1.bf16.msra.mxu0 0
      %691 = vmatprep.subr.bf16.mxu0 0
      %692 = vmatpush1.bf16.msra.mxu0 0
      %693 = vmatprep.subr.bf16.mxu0 0
      %694 = vmatpush1.bf16.msra.mxu0 0
      %695 = vmatprep.subr.bf16.mxu0 0
      %696 = vmatpush1.bf16.msra.mxu0 0
      %697 = vmatprep.subr.bf16.mxu0 0
      %698 = vmatpush1.bf16.msra.mxu0 0
      %699 = vmatprep.subr.bf16.mxu0 0
      %700 = vmatpush1.bf16.msra.mxu0 0
      %701 = vmatprep.subr.bf16.mxu0 0
      %702 = vmatpush1.bf16.msra.mxu0 0
      %703 = vmatprep.subr.bf16.mxu0 0
      %704 = vmatpush1.bf16.msra.mxu0 0
      %705 = vmatprep.subr.bf16.mxu0 0
      %706 = vmatpush1.bf16.msra.mxu0 0
      %707 = vmatprep.subr.bf16.mxu0 0
      %708 = vmatpush1.bf16.msra.mxu0 0
      %709 = vmatprep.subr.bf16.mxu0 0
      %710 = vmatpush1.bf16.msra.mxu0 0
      %711 = vmatprep.mubr.bf16.mxu0 0
      %712 = vmatmul.mubr.bf16.gmra.mrb[0].mxu0 %v650
      %v713 = vpop.f32.mrb[0].mxu0
      %v714 = vadd.f32 0.0, %v713
      %v715 = vpop.f32.mrb[0].mxu0
      %v716 = vpop.f32.mrb[0].mxu0
      %v717 = vadd.f32 0.0, %v716
      %v718 = vpop.f32.mrb[0].mxu0
      %719 = vmatprep.mubr.bf16.mxu0 0
      %720 = vmatmul.mubr.bf16.gmra.mrb[0].mxu0 %v653
      %v721 = vpop.f32.mrb[0].mxu0
      %v722 = vadd.f32 0.0, %v721
      %v723 = vpop.f32.mrb[0].mxu0
      %v724 = vpop.f32.mrb[0].mxu0
      %v725 = vadd.f32 0.0, %v724
      %v726 = vpop.f32.mrb[0].mxu0
      %727 = vmatprep.mubr.bf16.mxu0 0
      %728 = vmatmul.mubr.bf16.gmra.mrb[0].mxu0 %v656
      %v729 = vpop.f32.mrb[0].mxu0
      %v730 = vadd.f32 0.0, %v729
      %v731 = vpop.f32.mrb[0].mxu0
      %v732 = vpop.f32.mrb[0].mxu0
      %v733 = vadd.f32 0.0, %v732
      %v734 = vpop.f32.mrb[0].mxu0
      %735 = vmatprep.mubr.bf16.mxu0 0
      %736 = vmatmul.mubr.bf16.gmra.mrb[0].mxu0 %v659
      %v737 = vpop.f32.mrb[0].mxu0
      %v738 = vadd.f32 0.0, %v737
      %v739 = vpop.f32.mrb[0].mxu0
      %v740 = vpop.f32.mrb[0].mxu0
      %v741 = vadd.f32 0.0, %v740
      %v742 = vpop.f32.mrb[0].mxu0
      %743 = vmatprep.mubr.bf16.mxu0 0
      %744 = vmatmul.mubr.bf16.gmra.mrb[0].mxu0 %v662
      %v745 = vpop.f32.mrb[0].mxu0
      %v746 = vadd.f32 0.0, %v745
      %v747 = vpop.f32.mrb[0].mxu0
      %v748 = vpop.f32.mrb[0].mxu0
      %v749 = vadd.f32 0.0, %v748
      %v750 = vpop.f32.mrb[0].mxu0
      %751 = vmatprep.mubr.bf16.mxu0 0
      %752 = vmatmul.mubr.bf16.gmra.mrb[0].mxu0 %v665
      %v753 = vpop.f32.mrb[0].mxu0
      %v754 = vadd.f32 0.0, %v753
      %v755 = vpop.f32.mrb[0].mxu0
      %v756 = vpop.f32.mrb[0].mxu0
      %v757 = vadd.f32 0.0, %v756
      %v758 = vpop.f32.mrb[0].mxu0
      %759 = vmatprep.mubr.bf16.mxu0 0
      %760 = vmatmul.mubr.bf16.gmra.mrb[0].mxu0 %v668
      %v761 = vpop.f32.mrb[0].mxu0
      %v762 = vadd.f32 0.0, %v761
      %v763 = vpop.f32.mrb[0].mxu0
      %v764 = vpop.f32.mrb[0].mxu0
      %v765 = vadd.f32 0.0, %v764
      %v766 = vpop.f32.mrb[0].mxu0
      %767 = vmatprep.mubr.bf16.mxu0 0
      %768 = vmatmul.mubr.bf16.gmra.mrb[0].mxu0 %v671
      %v769 = vpop.f32.mrb[0].mxu0
      %v770 = vadd.f32 0.0, %v769
      %v771 = vpop.f32.mrb[0].mxu0
      %v772 = vpop.f32.mrb[0].mxu0
      %v773 = vadd.f32 0.0, %v772
      %v774 = vpop.f32.mrb[0].mxu0
      %775 = vmatprep.mubr.bf16.mxu0 0
      %776 = vmatmul.mubr.bf16.gmra.mrb[0].mxu0 %v674
      %v777 = vpop.f32.mrb[0].mxu0
      %v778 = vadd.f32 0.0, %v777
      %v779 = vpop.f32.mrb[0].mxu0
      %v780 = vpop.f32.mrb[0].mxu0
      %v781 = vadd.f32 0.0, %v780
      %v782 = vpop.f32.mrb[0].mxu0
      %783 = vdwg.mxu0
      %v784 = vadd.f32 %v553, %v714
      %v785 = vadd.f32 %v556, %v717
      %v786 = vadd.f32 %v561, %v722
      %v787 = vadd.f32 %v564, %v725
      %v788 = vadd.f32 %v569, %v730
      %v789 = vadd.f32 %v572, %v733
      %v790 = vadd.f32 %v577, %v738
      %v791 = vadd.f32 %v580, %v741
      %v792 = vadd.f32 %v585, %v746
      %v793 = vadd.f32 %v588, %v749
      %v794 = vadd.f32 %v593, %v754
      %v795 = vadd.f32 %v596, %v757
      %v796 = vadd.f32 %v601, %v762
      %v797 = vadd.f32 %v604, %v765
      %v798 = vadd.f32 %v609, %v770
      %v799 = vadd.f32 %v612, %v773
      %v800 = vadd.f32 %v617, %v778
      %v801 = vadd.f32 %v620, %v781
      %v802 = vld [vmem:[%s195 + $0x8] sm:$0xe]
      %v803 = vld [vmem:[%s195 + $0xc] sm:$0xf]
      %v804 = vld [vmem:[%s195 + $0x10] sm:$0xf]
      %v805 = vld [vmem:[%s195 + $0x14] sm:$0xf]
      %v806 = vld [vmem:[%s195 + $0x18] sm:$0xf]
      %v807 = vld [vmem:[%s195 + $0x1c] sm:$0xf]
      %v808 = vld [vmem:[%s195 + $0x20] sm:$0xf]
      %v809 = vld [vmem:[%s195 + $0x24] sm:$0xf]
      %v810 = vld [vmem:[%s195 + $0x28] sm:$0xf]
      %v811 = vld [vmem:[%s195 + $0x2c] sm:$0xf]
      %v812 = vld [vmem:[%s195 + $0x30] sm:$0xf]
      %v813 = vld [vmem:[%s195 + $0x34] sm:$0xf]
      %v814 = vld [vmem:[%s195 + $0x38] sm:$0xf]
      %v815 = vld [vmem:[%s195 + $0x3c] sm:$0xf]
      %v816 = vld [vmem:[%s195 + $0x40] sm:$0xf]
      %v817 = vld [vmem:[%s195 + $0x44] sm:$0xf]
      %v818 = vld [vmem:[%s195 + $0x48] sm:$0xf]
      %v819 = vld [vmem:[%s195 + $0x4c] sm:$0xf]
      %v820 = vld [vmem:[%s195 + $0x50] sm:$0x1]
      %s821 = scalar_lea.vmem %s199, 6
      %v822 = vld [vmem:[%s821] sm:$0x3]
      %v842 = vunpack.c.l.b16 %v802
      %v843 = vunpack.c.l.b16 %v803
      %v844 = vunpack.c.l.b16 %v804
      %v845 = vunpack.c.l.b16 %v805
      %v846 = vunpack.c.l.b16 %v806
      %v847 = vunpack.c.l.b16 %v807
      %v848 = vunpack.c.l.b16 %v808
      %v849 = vunpack.c.l.b16 %v809
      %v850 = vunpack.c.l.b16 %v810
      %v851 = vunpack.c.l.b16 %v811
      %v852 = vunpack.c.l.b16 %v812
      %v853 = vunpack.c.l.b16 %v813
      %v854 = vunpack.c.l.b16 %v814
      %v855 = vunpack.c.l.b16 %v815
      %v856 = vunpack.c.l.b16 %v816
      %v857 = vunpack.c.l.b16 %v817
      %v858 = vunpack.c.l.b16 %v818
      %v859 = vunpack.c.l.b16 %v819
      %v860 = vunpack.c.l.b16 %v820
      %v861 = vpack.c.b16 %v843, %v842
      %v862 = vpack.c.b16 %v845, %v844
      %v863 = vpack.c.b16 %v847, %v846
      %v864 = vpack.c.b16 %v849, %v848
      %v865 = vpack.c.b16 %v851, %v850
      %v866 = vpack.c.b16 %v853, %v852
      %v867 = vpack.c.b16 %v855, %v854
      %v868 = vpack.c.b16 %v857, %v856
      %v869 = vpack.c.b16 %v859, %v858
      %v870 = vpack.c.b16 %v860, %v860
      %v871 = vrot.slane %v861, 1
      %v872 = vrot.slane %v862, 1
      %v873 = vsel %vm629, %v871, %v872
      %v874 = vrot.slane %v863, 1
      %v875 = vsel %vm629, %v872, %v874
      %v876 = vrot.slane %v864, 1
      %v877 = vsel %vm629, %v874, %v876
      %v878 = vrot.slane %v865, 1
      %v879 = vsel %vm629, %v876, %v878
      %v880 = vrot.slane %v866, 1
      %v881 = vsel %vm629, %v878, %v880
      %v882 = vrot.slane %v867, 1
      %v883 = vsel %vm629, %v880, %v882
      %v884 = vrot.slane %v868, 1
      %v885 = vsel %vm629, %v882, %v884
      %v886 = vrot.slane %v869, 1
      %v887 = vsel %vm629, %v884, %v886
      %v888 = vrot.slane %v870, 1
      %v889 = vsel %vm629, %v886, %v888
      %v891 = vsel %vm360, %v873, 0
      %v894 = vsel %vm360, %v875, 0
      %v897 = vsel %vm360, %v877, 0
      %v900 = vsel %vm360, %v879, 0
      %v903 = vsel %vm360, %v881, 0
      %v906 = vsel %vm360, %v883, 0
      %v909 = vsel %vm360, %v885, 0
      %v912 = vsel %vm360, %v887, 0
      %v915 = vsel %vm360, %v889, 0
      %v918 = vsel %vm388, %v822, 0
      %920 = vmatprep.subr.bf16.mxu0 0
      %921 = vmatpush1.bf16.msra.mxu0 %v918
      %922 = vmatprep.subr.bf16.mxu0 0
      %923 = vmatpush1.bf16.msra.mxu0 0
      %924 = vmatprep.subr.bf16.mxu0 0
      %925 = vmatpush1.bf16.msra.mxu0 0
      %926 = vmatprep.subr.bf16.mxu0 0
      %927 = vmatpush1.bf16.msra.mxu0 0
      %928 = vmatprep.subr.bf16.mxu0 0
      %929 = vmatpush1.bf16.msra.mxu0 0
      %930 = vmatprep.subr.bf16.mxu0 0
      %931 = vmatpush1.bf16.msra.mxu0 0
      %932 = vmatprep.subr.bf16.mxu0 0
      %933 = vmatpush1.bf16.msra.mxu0 0
      %934 = vmatprep.subr.bf16.mxu0 0
      %935 = vmatpush1.bf16.msra.mxu0 0
      %936 = vmatprep.subr.bf16.mxu0 0
      %937 = vmatpush1.bf16.msra.mxu0 0
      %938 = vmatprep.subr.bf16.mxu0 0
      %939 = vmatpush1.bf16.msra.mxu0 0
      %940 = vmatprep.subr.bf16.mxu0 0
      %941 = vmatpush1.bf16.msra.mxu0 0
      %942 = vmatprep.subr.bf16.mxu0 0
      %943 = vmatpush1.bf16.msra.mxu0 0
      %944 = vmatprep.subr.bf16.mxu0 0
      %945 = vmatpush1.bf16.msra.mxu0 0
      %946 = vmatprep.subr.bf16.mxu0 0
      %947 = vmatpush1.bf16.msra.mxu0 0
      %948 = vmatprep.subr.bf16.mxu0 0
      %949 = vmatpush1.bf16.msra.mxu0 0
      %950 = vmatprep.subr.bf16.mxu0 0
      %951 = vmatpush1.bf16.msra.mxu0 0
      %952 = vmatprep.mubr.bf16.mxu0 0
      %953 = vmatmul.mubr.bf16.gmra.mrb[0].mxu0 %v891
      %v954 = vpop.f32.mrb[0].mxu0
      %v955 = vadd.f32 0.0, %v954
      %v956 = vpop.f32.mrb[0].mxu0
      %v957 = vpop.f32.mrb[0].mxu0
      %v958 = vadd.f32 0.0, %v957
      %v959 = vpop.f32.mrb[0].mxu0
      %960 = vmatprep.mubr.bf16.mxu0 0
      %961 = vmatmul.mubr.bf16.gmra.mrb[0].mxu0 %v894
      %v962 = vpop.f32.mrb[0].mxu0
      %v963 = vadd.f32 0.0, %v962
      %v964 = vpop.f32.mrb[0].mxu0
      %v965 = vpop.f32.mrb[0].mxu0
      %v966 = vadd.f32 0.0, %v965
      %v967 = vpop.f32.mrb[0].mxu0
      %968 = vmatprep.mubr.bf16.mxu0 0
      %969 = vmatmul.mubr.bf16.gmra.mrb[0].mxu0 %v897
      %v970 = vpop.f32.mrb[0].mxu0
      %v971 = vadd.f32 0.0, %v970
      %v972 = vpop.f32.mrb[0].mxu0
      %v973 = vpop.f32.mrb[0].mxu0
      %v974 = vadd.f32 0.0, %v973
      %v975 = vpop.f32.mrb[0].mxu0
      %976 = vmatprep.mubr.bf16.mxu0 0
      %977 = vmatmul.mubr.bf16.gmra.mrb[0].mxu0 %v900
      %v978 = vpop.f32.mrb[0].mxu0
      %v979 = vadd.f32 0.0, %v978
      %v980 = vpop.f32.mrb[0].mxu0
      %v981 = vpop.f32.mrb[0].mxu0
      %v982 = vadd.f32 0.0, %v981
      %v983 = vpop.f32.mrb[0].mxu0
      %984 = vmatprep.mubr.bf16.mxu0 0
      %985 = vmatmul.mubr.bf16.gmra.mrb[0].mxu0 %v903
      %v986 = vpop.f32.mrb[0].mxu0
      %v987 = vadd.f32 0.0, %v986
      %v988 = vpop.f32.mrb[0].mxu0
      %v989 = vpop.f32.mrb[0].mxu0
      %v990 = vadd.f32 0.0, %v989
      %v991 = vpop.f32.mrb[0].mxu0
      %992 = vmatprep.mubr.bf16.mxu0 0
      %993 = vmatmul.mubr.bf16.gmra.mrb[0].mxu0 %v906
      %v994 = vpop.f32.mrb[0].mxu0
      %v995 = vadd.f32 0.0, %v994
      %v996 = vpop.f32.mrb[0].mxu0
      %v997 = vpop.f32.mrb[0].mxu0
      %v998 = vadd.f32 0.0, %v997
      %v999 = vpop.f32.mrb[0].mxu0
      %1000 = vmatprep.mubr.bf16.mxu0 0
      %1001 = vmatmul.mubr.bf16.gmra.mrb[0].mxu0 %v909
      %v1002 = vpop.f32.mrb[0].mxu0
      %v1003 = vadd.f32 0.0, %v1002
      %v1004 = vpop.f32.mrb[0].mxu0
      %v1005 = vpop.f32.mrb[0].mxu0
      %v1006 = vadd.f32 0.0, %v1005
      %v1007 = vpop.f32.mrb[0].mxu0
      %1008 = vmatprep.mubr.bf16.mxu0 0
      %1009 = vmatmul.mubr.bf16.gmra.mrb[0].mxu0 %v912
      %v1010 = vpop.f32.mrb[0].mxu0
      %v1011 = vadd.f32 0.0, %v1010
      %v1012 = vpop.f32.mrb[0].mxu0
      %v1013 = vpop.f32.mrb[0].mxu0
      %v1014 = vadd.f32 0.0, %v1013
      %v1015 = vpop.f32.mrb[0].mxu0
      %1016 = vmatprep.mubr.bf16.mxu0 0
      %1017 = vmatmul.mubr.bf16.gmra.mrb[0].mxu0 %v915
      %v1018 = vpop.f32.mrb[0].mxu0
      %v1019 = vadd.f32 0.0, %v1018
      %v1020 = vpop.f32.mrb[0].mxu0
      %v1021 = vpop.f32.mrb[0].mxu0
      %v1022 = vadd.f32 0.0, %v1021
      %v1023 = vpop.f32.mrb[0].mxu0
      %1024 = vdwg.mxu0
      %v1025 = vadd.f32 %v784, %v955
      %v1026 = vadd.f32 %v785, %v958
      %v1027 = vadd.f32 %v786, %v963
      %v1028 = vadd.f32 %v787, %v966
      %v1029 = vadd.f32 %v788, %v971
      %v1030 = vadd.f32 %v789, %v974
      %v1031 = vadd.f32 %v790, %v979
      %v1032 = vadd.f32 %v791, %v982
      %v1033 = vadd.f32 %v792, %v987
      %v1034 = vadd.f32 %v793, %v990
      %v1035 = vadd.f32 %v794, %v995
      %v1036 = vadd.f32 %v795, %v998
      %v1037 = vadd.f32 %v796, %v1003
      %v1038 = vadd.f32 %v797, %v1006
      %v1039 = vadd.f32 %v798, %v1011
      %v1040 = vadd.f32 %v799, %v1014
      %v1041 = vadd.f32 %v800, %v1019
      %v1042 = vadd.f32 %v801, %v1022
      %v1043 = vld [vmem:[%s195 + $0x50] sm:$0x3]
      %s1044 = scalar_lea.vmem %s199, 8
      %v1045 = vld [vmem:[%s1044] sm:$0x3]
      %v1047 = vunpack.c.l.b16 %v1043
      %v1048 = vpack.c.b16 %v1047, %v1047
      %vm1049 = vsmask.f32 6400
      %v1051 = vshrl.u32 %v861, 16
      %v1053 = vrot.slane %v1051, 1
      %v1054 = vshll.u32 %v861, 16
      %v1056 = vrot.slane %v1054, 2
      %v1057 = vor.u32 %v1053, %v1056
      %v1059 = vshrl.u32 %v862, 16
      %v1061 = vrot.slane %v1059, 1
      %v1062 = vshll.u32 %v862, 16
      %v1064 = vrot.slane %v1062, 2
      %v1065 = vor.u32 %v1061, %v1064
      %v1066 = vsel %vm1049, %v1057, %v1065
      %v1068 = vshrl.u32 %v863, 16
      %v1070 = vrot.slane %v1068, 1
      %v1071 = vshll.u32 %v863, 16
      %v1073 = vrot.slane %v1071, 2
      %v1074 = vor.u32 %v1070, %v1073
      %v1075 = vsel %vm1049, %v1065, %v1074
      %v1077 = vshrl.u32 %v864, 16
      %v1079 = vrot.slane %v1077, 1
      %v1080 = vshll.u32 %v864, 16
      %v1082 = vrot.slane %v1080, 2
      %v1083 = vor.u32 %v1079, %v1082
      %v1084 = vsel %vm1049, %v1074, %v1083
      %v1086 = vshrl.u32 %v865, 16
      %v1088 = vrot.slane %v1086, 1
      %v1089 = vshll.u32 %v865, 16
      %v1091 = vrot.slane %v1089, 2
      %v1092 = vor.u32 %v1088, %v1091
      %v1093 = vsel %vm1049, %v1083, %v1092
      %v1095 = vshrl.u32 %v866, 16
      %v1097 = vrot.slane %v1095, 1
      %v1098 = vshll.u32 %v866, 16
      %v1100 = vrot.slane %v1098, 2
      %v1101 = vor.u32 %v1097, %v1100
      %v1102 = vsel %vm1049, %v1092, %v1101
      %v1104 = vshrl.u32 %v867, 16
      %v1106 = vrot.slane %v1104, 1
      %v1107 = vshll.u32 %v867, 16
      %v1109 = vrot.slane %v1107, 2
      %v1110 = vor.u32 %v1106, %v1109
      %v1111 = vsel %vm1049, %v1101, %v1110
      %v1113 = vshrl.u32 %v868, 16
      %v1115 = vrot.slane %v1113, 1
      %v1116 = vshll.u32 %v868, 16
      %v1118 = vrot.slane %v1116, 2
      %v1119 = vor.u32 %v1115, %v1118
      %v1120 = vsel %vm1049, %v1110, %v1119
      %v1122 = vshrl.u32 %v869, 16
      %v1124 = vrot.slane %v1122, 1
      %v1125 = vshll.u32 %v869, 16
      %v1127 = vrot.slane %v1125, 2
      %v1128 = vor.u32 %v1124, %v1127
      %v1129 = vsel %vm1049, %v1119, %v1128
      %v1131 = vshrl.u32 %v1048, 16
      %v1133 = vrot.slane %v1131, 1
      %v1134 = vshll.u32 %v1048, 16
      %v1136 = vrot.slane %v1134, 2
      %v1137 = vor.u32 %v1133, %v1136
      %v1138 = vsel %vm1049, %v1128, %v1137
      %v1140 = vsel %vm360, %v1066, 0
      %v1143 = vsel %vm360, %v1075, 0
      %v1146 = vsel %vm360, %v1084, 0
      %v1149 = vsel %vm360, %v1093, 0
      %v1152 = vsel %vm360, %v1102, 0
      %v1155 = vsel %vm360, %v1111, 0
      %v1158 = vsel %vm360, %v1120, 0
      %v1161 = vsel %vm360, %v1129, 0
      %v1164 = vsel %vm360, %v1138, 0
      %v1167 = vsel %vm388, %v1045, 0
      %1169 = vmatprep.subr.bf16.mxu0 0
      %1170 = vmatpush1.bf16.msra.mxu0 %v1167
      %1171 = vmatprep.subr.bf16.mxu0 0
      %1172 = vmatpush1.bf16.msra.mxu0 0
      %1173 = vmatprep.subr.bf16.mxu0 0
      %1174 = vmatpush1.bf16.msra.mxu0 0
      %1175 = vmatprep.subr.bf16.mxu0 0
      %1176 = vmatpush1.bf16.msra.mxu0 0
      %1177 = vmatprep.subr.bf16.mxu0 0
      %1178 = vmatpush1.bf16.msra.mxu0 0
      %1179 = vmatprep.subr.bf16.mxu0 0
      %1180 = vmatpush1.bf16.msra.mxu0 0
      %1181 = vmatprep.subr.bf16.mxu0 0
      %1182 = vmatpush1.bf16.msra.mxu0 0
      %1183 = vmatprep.subr.bf16.mxu0 0
      %1184 = vmatpush1.bf16.msra.mxu0 0
      %1185 = vmatprep.subr.bf16.mxu0 0
      %1186 = vmatpush1.bf16.msra.mxu0 0
      %1187 = vmatprep.subr.bf16.mxu0 0
      %1188 = vmatpush1.bf16.msra.mxu0 0
      %1189 = vmatprep.subr.bf16.mxu0 0
      %1190 = vmatpush1.bf16.msra.mxu0 0
      %1191 = vmatprep.subr.bf16.mxu0 0
      %1192 = vmatpush1.bf16.msra.mxu0 0
      %1193 = vmatprep.subr.bf16.mxu0 0
      %1194 = vmatpush1.bf16.msra.mxu0 0
      %1195 = vmatprep.subr.bf16.mxu0 0
      %1196 = vmatpush1.bf16.msra.mxu0 0
      %1197 = vmatprep.subr.bf16.mxu0 0
      %1198 = vmatpush1.bf16.msra.mxu0 0
      %1199 = vmatprep.subr.bf16.mxu0 0
      %1200 = vmatpush1.bf16.msra.mxu0 0
      %1201 = vmatprep.mubr.bf16.mxu0 0
      %1202 = vmatmul.mubr.bf16.gmra.mrb[0].mxu0 %v1140
      %v1203 = vpop.f32.mrb[0].mxu0
      %v1204 = vadd.f32 0.0, %v1203
      %v1205 = vpop.f32.mrb[0].mxu0
      %v1206 = vpop.f32.mrb[0].mxu0
      %v1207 = vadd.f32 0.0, %v1206
      %v1208 = vpop.f32.mrb[0].mxu0
      %1209 = vmatprep.mubr.bf16.mxu0 0
      %1210 = vmatmul.mubr.bf16.gmra.mrb[0].mxu0 %v1143
      %v1211 = vpop.f32.mrb[0].mxu0
      %v1212 = vadd.f32 0.0, %v1211
      %v1213 = vpop.f32.mrb[0].mxu0
      %v1214 = vpop.f32.mrb[0].mxu0
      %v1215 = vadd.f32 0.0, %v1214
      %v1216 = vpop.f32.mrb[0].mxu0
      %1217 = vmatprep.mubr.bf16.mxu0 0
      %1218 = vmatmul.mubr.bf16.gmra.mrb[0].mxu0 %v1146
      %v1219 = vpop.f32.mrb[0].mxu0
      %v1220 = vadd.f32 0.0, %v1219
      %v1221 = vpop.f32.mrb[0].mxu0
      %v1222 = vpop.f32.mrb[0].mxu0
      %v1223 = vadd.f32 0.0, %v1222
      %v1224 = vpop.f32.mrb[0].mxu0
      %1225 = vmatprep.mubr.bf16.mxu0 0
      %1226 = vmatmul.mubr.bf16.gmra.mrb[0].mxu0 %v1149
      %v1227 = vpop.f32.mrb[0].mxu0
      %v1228 = vadd.f32 0.0, %v1227
      %v1229 = vpop.f32.mrb[0].mxu0
      %v1230 = vpop.f32.mrb[0].mxu0
      %v1231 = vadd.f32 0.0, %v1230
      %v1232 = vpop.f32.mrb[0].mxu0
      %1233 = vmatprep.mubr.bf16.mxu0 0
      %1234 = vmatmul.mubr.bf16.gmra.mrb[0].mxu0 %v1152
      %v1235 = vpop.f32.mrb[0].mxu0
      %v1236 = vadd.f32 0.0, %v1235
      %v1237 = vpop.f32.mrb[0].mxu0
      %v1238 = vpop.f32.mrb[0].mxu0
      %v1239 = vadd.f32 0.0, %v1238
      %v1240 = vpop.f32.mrb[0].mxu0
      %1241 = vmatprep.mubr.bf16.mxu0 0
      %1242 = vmatmul.mubr.bf16.gmra.mrb[0].mxu0 %v1155
      %v1243 = vpop.f32.mrb[0].mxu0
      %v1244 = vadd.f32 0.0, %v1243
      %v1245 = vpop.f32.mrb[0].mxu0
      %v1246 = vpop.f32.mrb[0].mxu0
      %v1247 = vadd.f32 0.0, %v1246
      %v1248 = vpop.f32.mrb[0].mxu0
      %1249 = vmatprep.mubr.bf16.mxu0 0
      %1250 = vmatmul.mubr.bf16.gmra.mrb[0].mxu0 %v1158
      %v1251 = vpop.f32.mrb[0].mxu0
      %v1252 = vadd.f32 0.0, %v1251
      %v1253 = vpop.f32.mrb[0].mxu0
      %v1254 = vpop.f32.mrb[0].mxu0
      %v1255 = vadd.f32 0.0, %v1254
      %v1256 = vpop.f32.mrb[0].mxu0
      %1257 = vmatprep.mubr.bf16.mxu0 0
      %1258 = vmatmul.mubr.bf16.gmra.mrb[0].mxu0 %v1161
      %v1259 = vpop.f32.mrb[0].mxu0
      %v1260 = vadd.f32 0.0, %v1259
      %v1261 = vpop.f32.mrb[0].mxu0
      %v1262 = vpop.f32.mrb[0].mxu0
      %v1263 = vadd.f32 0.0, %v1262
      %v1264 = vpop.f32.mrb[0].mxu0
      %1265 = vmatprep.mubr.bf16.mxu0 0
      %1266 = vmatmul.mubr.bf16.gmra.mrb[0].mxu0 %v1164
      %v1267 = vpop.f32.mrb[0].mxu0
      %v1268 = vadd.f32 0.0, %v1267
      %v1269 = vpop.f32.mrb[0].mxu0
      %v1270 = vpop.f32.mrb[0].mxu0
      %v1271 = vadd.f32 0.0, %v1270
      %v1272 = vpop.f32.mrb[0].mxu0
      %1273 = vdwg.mxu0
      %v1274 = vadd.f32 %v1025, %v1204
      %v1275 = vadd.f32 %v1026, %v1207
      %v1276 = vadd.f32 %v1027, %v1212
      %v1277 = vadd.f32 %v1028, %v1215
      %v1278 = vadd.f32 %v1029, %v1220
      %v1279 = vadd.f32 %v1030, %v1223
      %v1280 = vadd.f32 %v1031, %v1228
      %v1281 = vadd.f32 %v1032, %v1231
      %v1282 = vadd.f32 %v1033, %v1236
      %v1283 = vadd.f32 %v1034, %v1239
      %v1284 = vadd.f32 %v1035, %v1244
      %v1285 = vadd.f32 %v1036, %v1247
      %v1286 = vadd.f32 %v1037, %v1252
      %v1287 = vadd.f32 %v1038, %v1255
      %v1288 = vadd.f32 %v1039, %v1260
      %v1289 = vadd.f32 %v1040, %v1263
      %v1290 = vadd.f32 %v1041, %v1268
      %v1291 = vadd.f32 %v1042, %v1271
      %v1292 = vld [vmem:[%s195 + $0x8] sm:$0xc]
      %s1293 = scalar_lea.vmem %s199, 10
      %v1294 = vld [vmem:[%s1293] sm:$0x3]
      %v1296 = vunpack.c.l.b16 %v1292
      %v1297 = vpack.c.b16 %v843, %v1296
      %vm1298 = vcmask 1045504
      %v1299 = vrot.slane %v1297, 2
      %v1300 = vrot.slane %v862, 2
      %v1301 = vsel %vm1298, %v1299, %v1300
      %v1302 = vrot.slane %v863, 2
      %v1303 = vsel %vm1298, %v1300, %v1302
      %v1304 = vrot.slane %v864, 2
      %v1305 = vsel %vm1298, %v1302, %v1304
      %v1306 = vrot.slane %v865, 2
      %v1307 = vsel %vm1298, %v1304, %v1306
      %v1308 = vrot.slane %v866, 2
      %v1309 = vsel %vm1298, %v1306, %v1308
      %v1310 = vrot.slane %v867, 2
      %v1311 = vsel %vm1298, %v1308, %v1310
      %v1312 = vrot.slane %v868, 2
      %v1313 = vsel %vm1298, %v1310, %v1312
      %v1314 = vrot.slane %v869, 2
      %v1315 = vsel %vm1298, %v1312, %v1314
      %v1316 = vrot.slane %v1048, 2
      %v1317 = vsel %vm1298, %v1314, %v1316
      %v1319 = vsel %vm360, %v1301, 0
      %v1322 = vsel %vm360, %v1303, 0
      %v1325 = vsel %vm360, %v1305, 0
      %v1328 = vsel %vm360, %v1307, 0
      %v1331 = vsel %vm360, %v1309, 0
      %v1334 = vsel %vm360, %v1311, 0
      %v1337 = vsel %vm360, %v1313, 0
      %v1340 = vsel %vm360, %v1315, 0
      %v1343 = vsel %vm360, %v1317, 0
      %v1346 = vsel %vm388, %v1294, 0
      %1348 = vmatprep.subr.bf16.mxu0 0
      %1349 = vmatpush1.bf16.msra.mxu0 %v1346
      %1350 = vmatprep.subr.bf16.mxu0 0
      %1351 = vmatpush1.bf16.msra.mxu0 0
      %1352 = vmatprep.subr.bf16.mxu0 0
      %1353 = vmatpush1.bf16.msra.mxu0 0
      %1354 = vmatprep.subr.bf16.mxu0 0
      %1355 = vmatpush1.bf16.msra.mxu0 0
      %1356 = vmatprep.subr.bf16.mxu0 0
      %1357 = vmatpush1.bf16.msra.mxu0 0
      %1358 = vmatprep.subr.bf16.mxu0 0
      %1359 = vmatpush1.bf16.msra.mxu0 0
      %1360 = vmatprep.subr.bf16.mxu0 0
      %1361 = vmatpush1.bf16.msra.mxu0 0
      %1362 = vmatprep.subr.bf16.mxu0 0
      %1363 = vmatpush1.bf16.msra.mxu0 0
      %1364 = vmatprep.subr.bf16.mxu0 0
      %1365 = vmatpush1.bf16.msra.mxu0 0
      %1366 = vmatprep.subr.bf16.mxu0 0
      %1367 = vmatpush1.bf16.msra.mxu0 0
      %1368 = vmatprep.subr.bf16.mxu0 0
      %1369 = vmatpush1.bf16.msra.mxu0 0
      %1370 = vmatprep.subr.bf16.mxu0 0
      %1371 = vmatpush1.bf16.msra.mxu0 0
      %1372 = vmatprep.subr.bf16.mxu0 0
      %1373 = vmatpush1.bf16.msra.mxu0 0
      %1374 = vmatprep.subr.bf16.mxu0 0
      %1375 = vmatpush1.bf16.msra.mxu0 0
      %1376 = vmatprep.subr.bf16.mxu0 0
      %1377 = vmatpush1.bf16.msra.mxu0 0
      %1378 = vmatprep.subr.bf16.mxu0 0
      %1379 = vmatpush1.bf16.msra.mxu0 0
      %1380 = vmatprep.mubr.bf16.mxu0 0
      %1381 = vmatmul.mubr.bf16.gmra.mrb[0].mxu0 %v1319
      %v1382 = vpop.f32.mrb[0].mxu0
      %v1383 = vadd.f32 0.0, %v1382
      %v1384 = vpop.f32.mrb[0].mxu0
      %v1385 = vpop.f32.mrb[0].mxu0
      %v1386 = vadd.f32 0.0, %v1385
      %v1387 = vpop.f32.mrb[0].mxu0
      %1388 = vmatprep.mubr.bf16.mxu0 0
      %1389 = vmatmul.mubr.bf16.gmra.mrb[0].mxu0 %v1322
      %v1390 = vpop.f32.mrb[0].mxu0
      %v1391 = vadd.f32 0.0, %v1390
      %v1392 = vpop.f32.mrb[0].mxu0
      %v1393 = vpop.f32.mrb[0].mxu0
      %v1394 = vadd.f32 0.0, %v1393
      %v1395 = vpop.f32.mrb[0].mxu0
      %1396 = vmatprep.mubr.bf16.mxu0 0
      %1397 = vmatmul.mubr.bf16.gmra.mrb[0].mxu0 %v1325
      %v1398 = vpop.f32.mrb[0].mxu0
      %v1399 = vadd.f32 0.0, %v1398
      %v1400 = vpop.f32.mrb[0].mxu0
      %v1401 = vpop.f32.mrb[0].mxu0
      %v1402 = vadd.f32 0.0, %v1401
      %v1403 = vpop.f32.mrb[0].mxu0
      %1404 = vmatprep.mubr.bf16.mxu0 0
      %1405 = vmatmul.mubr.bf16.gmra.mrb[0].mxu0 %v1328
      %v1406 = vpop.f32.mrb[0].mxu0
      %v1407 = vadd.f32 0.0, %v1406
      %v1408 = vpop.f32.mrb[0].mxu0
      %v1409 = vpop.f32.mrb[0].mxu0
      %v1410 = vadd.f32 0.0, %v1409
      %v1411 = vpop.f32.mrb[0].mxu0
      %1412 = vmatprep.mubr.bf16.mxu0 0
      %1413 = vmatmul.mubr.bf16.gmra.mrb[0].mxu0 %v1331
      %v1414 = vpop.f32.mrb[0].mxu0
      %v1415 = vadd.f32 0.0, %v1414
      %v1416 = vpop.f32.mrb[0].mxu0
      %v1417 = vpop.f32.mrb[0].mxu0
      %v1418 = vadd.f32 0.0, %v1417
      %v1419 = vpop.f32.mrb[0].mxu0
      %1420 = vmatprep.mubr.bf16.mxu0 0
      %1421 = vmatmul.mubr.bf16.gmra.mrb[0].mxu0 %v1334
      %v1422 = vpop.f32.mrb[0].mxu0
      %v1423 = vadd.f32 0.0, %v1422
      %v1424 = vpop.f32.mrb[0].mxu0
      %v1425 = vpop.f32.mrb[0].mxu0
      %v1426 = vadd.f32 0.0, %v1425
      %v1427 = vpop.f32.mrb[0].mxu0
      %1428 = vmatprep.mubr.bf16.mxu0 0
      %1429 = vmatmul.mubr.bf16.gmra.mrb[0].mxu0 %v1337
      %v1430 = vpop.f32.mrb[0].mxu0
      %v1431 = vadd.f32 0.0, %v1430
      %v1432 = vpop.f32.mrb[0].mxu0
      %v1433 = vpop.f32.mrb[0].mxu0
      %v1434 = vadd.f32 0.0, %v1433
      %v1435 = vpop.f32.mrb[0].mxu0
      %1436 = vmatprep.mubr.bf16.mxu0 0
      %1437 = vmatmul.mubr.bf16.gmra.mrb[0].mxu0 %v1340
      %v1438 = vpop.f32.mrb[0].mxu0
      %v1439 = vadd.f32 0.0, %v1438
      %v1440 = vpop.f32.mrb[0].mxu0
      %v1441 = vpop.f32.mrb[0].mxu0
      %v1442 = vadd.f32 0.0, %v1441
      %v1443 = vpop.f32.mrb[0].mxu0
      %1444 = vmatprep.mubr.bf16.mxu0 0
      %1445 = vmatmul.mubr.bf16.gmra.mrb[0].mxu0 %v1343
      %v1446 = vpop.f32.mrb[0].mxu0
      %v1447 = vadd.f32 0.0, %v1446
      %v1448 = vpop.f32.mrb[0].mxu0
      %v1449 = vpop.f32.mrb[0].mxu0
      %v1450 = vadd.f32 0.0, %v1449
      %v1451 = vpop.f32.mrb[0].mxu0
      %1452 = vdwg.mxu0
      %v1453 = vadd.f32 %v1274, %v1383
      %v1454 = vadd.f32 %v1275, %v1386
      %v1455 = vadd.f32 %v1276, %v1391
      %v1456 = vadd.f32 %v1277, %v1394
      %v1457 = vadd.f32 %v1278, %v1399
      %v1458 = vadd.f32 %v1279, %v1402
      %v1459 = vadd.f32 %v1280, %v1407
      %v1460 = vadd.f32 %v1281, %v1410
      %v1461 = vadd.f32 %v1282, %v1415
      %v1462 = vadd.f32 %v1283, %v1418
      %v1463 = vadd.f32 %v1284, %v1423
      %v1464 = vadd.f32 %v1285, %v1426
      %v1465 = vadd.f32 %v1286, %v1431
      %v1466 = vadd.f32 %v1287, %v1434
      %v1467 = vadd.f32 %v1288, %v1439
      %v1468 = vadd.f32 %v1289, %v1442
      %v1469 = vadd.f32 %v1290, %v1447
      %v1470 = vadd.f32 %v1291, %v1450
      %v1471 = vld [vmem:[%s195 + $0x10] sm:$0xc]
      %v1472 = vld [vmem:[%s195 + $0x14] sm:$0xf]
      %v1473 = vld [vmem:[%s195 + $0x18] sm:$0xf]
      %v1474 = vld [vmem:[%s195 + $0x1c] sm:$0xf]
      %v1475 = vld [vmem:[%s195 + $0x20] sm:$0xf]
      %v1476 = vld [vmem:[%s195 + $0x24] sm:$0xf]
      %v1477 = vld [vmem:[%s195 + $0x28] sm:$0xf]
      %v1478 = vld [vmem:[%s195 + $0x2c] sm:$0xf]
      %v1479 = vld [vmem:[%s195 + $0x30] sm:$0xf]
      %v1480 = vld [vmem:[%s195 + $0x34] sm:$0xf]
      %v1481 = vld [vmem:[%s195 + $0x38] sm:$0xf]
      %v1482 = vld [vmem:[%s195 + $0x3c] sm:$0xf]
      %v1483 = vld [vmem:[%s195 + $0x40] sm:$0xf]
      %v1484 = vld [vmem:[%s195 + $0x44] sm:$0xf]
      %v1485 = vld [vmem:[%s195 + $0x48] sm:$0xf]
      %v1486 = vld [vmem:[%s195 + $0x4c] sm:$0xf]
      %v1487 = vld [vmem:[%s195 + $0x50] sm:$0xf]
      %v1488 = vld [vmem:[%s195 + $0x54] sm:$0xf]
      %v1489 = vld [vmem:[%s195 + $0x58] sm:$0x3]
      %s1490 = scalar_lea.vmem %s199, 12
      %v1491 = vld [vmem:[%s1490] sm:$0x3]
      %v1511 = vunpack.c.l.b16 %v1471
      %v1512 = vunpack.c.l.b16 %v1472
      %v1513 = vunpack.c.l.b16 %v1473
      %v1514 = vunpack.c.l.b16 %v1474
      %v1515 = vunpack.c.l.b16 %v1475
      %v1516 = vunpack.c.l.b16 %v1476
      %v1517 = vunpack.c.l.b16 %v1477
      %v1518 = vunpack.c.l.b16 %v1478
      %v1519 = vunpack.c.l.b16 %v1479
      %v1520 = vunpack.c.l.b16 %v1480
      %v1521 = vunpack.c.l.b16 %v1481
      %v1522 = vunpack.c.l.b16 %v1482
      %v1523 = vunpack.c.l.b16 %v1483
      %v1524 = vunpack.c.l.b16 %v1484
      %v1525 = vunpack.c.l.b16 %v1485
      %v1526 = vunpack.c.l.b16 %v1486
      %v1527 = vunpack.c.l.b16 %v1487
      %v1528 = vunpack.c.l.b16 %v1488
      %v1529 = vunpack.c.l.b16 %v1489
      %v1530 = vpack.c.b16 %v1512, %v1511
      %v1531 = vpack.c.b16 %v1514, %v1513
      %v1532 = vpack.c.b16 %v1516, %v1515
      %v1533 = vpack.c.b16 %v1518, %v1517
      %v1534 = vpack.c.b16 %v1520, %v1519
      %v1535 = vpack.c.b16 %v1522, %v1521
      %v1536 = vpack.c.b16 %v1524, %v1523
      %v1537 = vpack.c.b16 %v1526, %v1525
      %v1538 = vpack.c.b16 %v1528, %v1527
      %v1539 = vpack.c.b16 %v1529, %v1529
      %v1540 = vrot.slane %v1530, 2
      %v1541 = vrot.slane %v1531, 2
      %v1542 = vsel %vm1298, %v1540, %v1541
      %v1543 = vrot.slane %v1532, 2
      %v1544 = vsel %vm1298, %v1541, %v1543
      %v1545 = vrot.slane %v1533, 2
      %v1546 = vsel %vm1298, %v1543, %v1545
      %v1547 = vrot.slane %v1534, 2
      %v1548 = vsel %vm1298, %v1545, %v1547
      %v1549 = vrot.slane %v1535, 2
      %v1550 = vsel %vm1298, %v1547, %v1549
      %v1551 = vrot.slane %v1536, 2
      %v1552 = vsel %vm1298, %v1549, %v1551
      %v1553 = vrot.slane %v1537, 2
      %v1554 = vsel %vm1298, %v1551, %v1553
      %v1555 = vrot.slane %v1538, 2
      %v1556 = vsel %vm1298, %v1553, %v1555
      %v1557 = vrot.slane %v1539, 2
      %v1558 = vsel %vm1298, %v1555, %v1557
      %v1560 = vsel %vm360, %v1542, 0
      %v1563 = vsel %vm360, %v1544, 0
      %v1566 = vsel %vm360, %v1546, 0
      %v1569 = vsel %vm360, %v1548, 0
      %v1572 = vsel %vm360, %v1550, 0
      %v1575 = vsel %vm360, %v1552, 0
      %v1578 = vsel %vm360, %v1554, 0
      %v1581 = vsel %vm360, %v1556, 0
      %v1584 = vsel %vm360, %v1558, 0
      %v1587 = vsel %vm388, %v1491, 0
      %1589 = vmatprep.subr.bf16.mxu0 0
      %1590 = vmatpush1.bf16.msra.mxu0 %v1587
      %1591 = vmatprep.subr.bf16.mxu0 0
      %1592 = vmatpush1.bf16.msra.mxu0 0
      %1593 = vmatprep.subr.bf16.mxu0 0
      %1594 = vmatpush1.bf16.msra.mxu0 0
      %1595 = vmatprep.subr.bf16.mxu0 0
      %1596 = vmatpush1.bf16.msra.mxu0 0
      %1597 = vmatprep.subr.bf16.mxu0 0
      %1598 = vmatpush1.bf16.msra.mxu0 0
      %1599 = vmatprep.subr.bf16.mxu0 0
      %1600 = vmatpush1.bf16.msra.mxu0 0
      %1601 = vmatprep.subr.bf16.mxu0 0
      %1602 = vmatpush1.bf16.msra.mxu0 0
      %1603 = vmatprep.subr.bf16.mxu0 0
      %1604 = vmatpush1.bf16.msra.mxu0 0
      %1605 = vmatprep.subr.bf16.mxu0 0
      %1606 = vmatpush1.bf16.msra.mxu0 0
      %1607 = vmatprep.subr.bf16.mxu0 0
      %1608 = vmatpush1.bf16.msra.mxu0 0
      %1609 = vmatprep.subr.bf16.mxu0 0
      %1610 = vmatpush1.bf16.msra.mxu0 0
      %1611 = vmatprep.subr.bf16.mxu0 0
      %1612 = vmatpush1.bf16.msra.mxu0 0
      %1613 = vmatprep.subr.bf16.mxu0 0
      %1614 = vmatpush1.bf16.msra.mxu0 0
      %1615 = vmatprep.subr.bf16.mxu0 0
      %1616 = vmatpush1.bf16.msra.mxu0 0
      %1617 = vmatprep.subr.bf16.mxu0 0
      %1618 = vmatpush1.bf16.msra.mxu0 0
      %1619 = vmatprep.subr.bf16.mxu0 0
      %1620 = vmatpush1.bf16.msra.mxu0 0
      %1621 = vmatprep.mubr.bf16.mxu0 0
      %1622 = vmatmul.mubr.bf16.gmra.mrb[0].mxu0 %v1560
      %v1623 = vpop.f32.mrb[0].mxu0
      %v1624 = vadd.f32 0.0, %v1623
      %v1625 = vpop.f32.mrb[0].mxu0
      %v1626 = vpop.f32.mrb[0].mxu0
      %v1627 = vadd.f32 0.0, %v1626
      %v1628 = vpop.f32.mrb[0].mxu0
      %1629 = vmatprep.mubr.bf16.mxu0 0
      %1630 = vmatmul.mubr.bf16.gmra.mrb[0].mxu0 %v1563
      %v1631 = vpop.f32.mrb[0].mxu0
      %v1632 = vadd.f32 0.0, %v1631
      %v1633 = vpop.f32.mrb[0].mxu0
      %v1634 = vpop.f32.mrb[0].mxu0
      %v1635 = vadd.f32 0.0, %v1634
      %v1636 = vpop.f32.mrb[0].mxu0
      %1637 = vmatprep.mubr.bf16.mxu0 0
      %1638 = vmatmul.mubr.bf16.gmra.mrb[0].mxu0 %v1566
      %v1639 = vpop.f32.mrb[0].mxu0
      %v1640 = vadd.f32 0.0, %v1639
      %v1641 = vpop.f32.mrb[0].mxu0
      %v1642 = vpop.f32.mrb[0].mxu0
      %v1643 = vadd.f32 0.0, %v1642
      %v1644 = vpop.f32.mrb[0].mxu0
      %1645 = vmatprep.mubr.bf16.mxu0 0
      %1646 = vmatmul.mubr.bf16.gmra.mrb[0].mxu0 %v1569
      %v1647 = vpop.f32.mrb[0].mxu0
      %v1648 = vadd.f32 0.0, %v1647
      %v1649 = vpop.f32.mrb[0].mxu0
      %v1650 = vpop.f32.mrb[0].mxu0
      %v1651 = vadd.f32 0.0, %v1650
      %v1652 = vpop.f32.mrb[0].mxu0
      %1653 = vmatprep.mubr.bf16.mxu0 0
      %1654 = vmatmul.mubr.bf16.gmra.mrb[0].mxu0 %v1572
      %v1655 = vpop.f32.mrb[0].mxu0
      %v1656 = vadd.f32 0.0, %v1655
      %v1657 = vpop.f32.mrb[0].mxu0
      %v1658 = vpop.f32.mrb[0].mxu0
      %v1659 = vadd.f32 0.0, %v1658
      %v1660 = vpop.f32.mrb[0].mxu0
      %1661 = vmatprep.mubr.bf16.mxu0 0
      %1662 = vmatmul.mubr.bf16.gmra.mrb[0].mxu0 %v1575
      %v1663 = vpop.f32.mrb[0].mxu0
      %v1664 = vadd.f32 0.0, %v1663
      %v1665 = vpop.f32.mrb[0].mxu0
      %v1666 = vpop.f32.mrb[0].mxu0
      %v1667 = vadd.f32 0.0, %v1666
      %v1668 = vpop.f32.mrb[0].mxu0
      %1669 = vmatprep.mubr.bf16.mxu0 0
      %1670 = vmatmul.mubr.bf16.gmra.mrb[0].mxu0 %v1578
      %v1671 = vpop.f32.mrb[0].mxu0
      %v1672 = vadd.f32 0.0, %v1671
      %v1673 = vpop.f32.mrb[0].mxu0
      %v1674 = vpop.f32.mrb[0].mxu0
      %v1675 = vadd.f32 0.0, %v1674
      %v1676 = vpop.f32.mrb[0].mxu0
      %1677 = vmatprep.mubr.bf16.mxu0 0
      %1678 = vmatmul.mubr.bf16.gmra.mrb[0].mxu0 %v1581
      %v1679 = vpop.f32.mrb[0].mxu0
      %v1680 = vadd.f32 0.0, %v1679
      %v1681 = vpop.f32.mrb[0].mxu0
      %v1682 = vpop.f32.mrb[0].mxu0
      %v1683 = vadd.f32 0.0, %v1682
      %v1684 = vpop.f32.mrb[0].mxu0
      %1685 = vmatprep.mubr.bf16.mxu0 0
      %1686 = vmatmul.mubr.bf16.gmra.mrb[0].mxu0 %v1584
      %v1687 = vpop.f32.mrb[0].mxu0
      %v1688 = vadd.f32 0.0, %v1687
      %v1689 = vpop.f32.mrb[0].mxu0
      %v1690 = vpop.f32.mrb[0].mxu0
      %v1691 = vadd.f32 0.0, %v1690
      %v1692 = vpop.f32.mrb[0].mxu0
      %1693 = vdwg.mxu0
      %v1694 = vadd.f32 %v1453, %v1624
      %v1695 = vadd.f32 %v1454, %v1627
      %v1696 = vadd.f32 %v1455, %v1632
      %v1697 = vadd.f32 %v1456, %v1635
      %v1698 = vadd.f32 %v1457, %v1640
      %v1699 = vadd.f32 %v1458, %v1643
      %v1700 = vadd.f32 %v1459, %v1648
      %v1701 = vadd.f32 %v1460, %v1651
      %v1702 = vadd.f32 %v1461, %v1656
      %v1703 = vadd.f32 %v1462, %v1659
      %v1704 = vadd.f32 %v1463, %v1664
      %v1705 = vadd.f32 %v1464, %v1667
      %v1706 = vadd.f32 %v1465, %v1672
      %v1707 = vadd.f32 %v1466, %v1675
      %v1708 = vadd.f32 %v1467, %v1680
      %v1709 = vadd.f32 %v1468, %v1683
      %v1710 = vadd.f32 %v1469, %v1688
      %v1711 = vadd.f32 %v1470, %v1691
      %v1712 = vld [vmem:[%s195 + $0x58] sm:$0x7]
      %s1713 = scalar_lea.vmem %s199, 14
      %v1714 = vld [vmem:[%s1713] sm:$0x3]
      %v1716 = vunpack.c.l.b16 %v1712
      %v1717 = vpack.c.b16 %v1716, %v1716
      %vm1718 = vsmask.f32 5376
      %v1720 = vshrl.u32 %v1530, 16
      %v1722 = vrot.slane %v1720, 2
      %v1723 = vshll.u32 %v1530, 16
      %v1725 = vrot.slane %v1723, 3
      %v1726 = vor.u32 %v1722, %v1725
      %v1728 = vshrl.u32 %v1531, 16
      %v1730 = vrot.slane %v1728, 2
      %v1731 = vshll.u32 %v1531, 16
      %v1733 = vrot.slane %v1731, 3
      %v1734 = vor.u32 %v1730, %v1733
      %v1735 = vsel %vm1718, %v1726, %v1734
      %v1737 = vshrl.u32 %v1532, 16
      %v1739 = vrot.slane %v1737, 2
      %v1740 = vshll.u32 %v1532, 16
      %v1742 = vrot.slane %v1740, 3
      %v1743 = vor.u32 %v1739, %v1742
      %v1744 = vsel %vm1718, %v1734, %v1743
      %v1746 = vshrl.u32 %v1533, 16
      %v1748 = vrot.slane %v1746, 2
      %v1749 = vshll.u32 %v1533, 16
      %v1751 = vrot.slane %v1749, 3
      %v1752 = vor.u32 %v1748, %v1751
      %v1753 = vsel %vm1718, %v1743, %v1752
      %v1755 = vshrl.u32 %v1534, 16
      %v1757 = vrot.slane %v1755, 2
      %v1758 = vshll.u32 %v1534, 16
      %v1760 = vrot.slane %v1758, 3
      %v1761 = vor.u32 %v1757, %v1760
      %v1762 = vsel %vm1718, %v1752, %v1761
      %v1764 = vshrl.u32 %v1535, 16
      %v1766 = vrot.slane %v1764, 2
      %v1767 = vshll.u32 %v1535, 16
      %v1769 = vrot.slane %v1767, 3
      %v1770 = vor.u32 %v1766, %v1769
      %v1771 = vsel %vm1718, %v1761, %v1770
      %v1773 = vshrl.u32 %v1536, 16
      %v1775 = vrot.slane %v1773, 2
      %v1776 = vshll.u32 %v1536, 16
      %v1778 = vrot.slane %v1776, 3
      %v1779 = vor.u32 %v1775, %v1778
      %v1780 = vsel %vm1718, %v1770, %v1779
      %v1782 = vshrl.u32 %v1537, 16
      %v1784 = vrot.slane %v1782, 2
      %v1785 = vshll.u32 %v1537, 16
      %v1787 = vrot.slane %v1785, 3
      %v1788 = vor.u32 %v1784, %v1787
      %v1789 = vsel %vm1718, %v1779, %v1788
      %v1791 = vshrl.u32 %v1538, 16
      %v1793 = vrot.slane %v1791, 2
      %v1794 = vshll.u32 %v1538, 16
      %v1796 = vrot.slane %v1794, 3
      %v1797 = vor.u32 %v1793, %v1796
      %v1798 = vsel %vm1718, %v1788, %v1797
      %v1800 = vshrl.u32 %v1717, 16
      %v1802 = vrot.slane %v1800, 2
      %v1803 = vshll.u32 %v1717, 16
      %v1805 = vrot.slane %v1803, 3
      %v1806 = vor.u32 %v1802, %v1805
      %v1807 = vsel %vm1718, %v1797, %v1806
      %v1809 = vsel %vm360, %v1735, 0
      %v1812 = vsel %vm360, %v1744, 0
      %v1815 = vsel %vm360, %v1753, 0
      %v1818 = vsel %vm360, %v1762, 0
      %v1821 = vsel %vm360, %v1771, 0
      %v1824 = vsel %vm360, %v1780, 0
      %v1827 = vsel %vm360, %v1789, 0
      %v1830 = vsel %vm360, %v1798, 0
      %v1833 = vsel %vm360, %v1807, 0
      %v1836 = vsel %vm388, %v1714, 0
      %1838 = vmatprep.subr.bf16.mxu0 0
      %1839 = vmatpush1.bf16.msra.mxu0 %v1836
      %1840 = vmatprep.subr.bf16.mxu0 0
      %1841 = vmatpush1.bf16.msra.mxu0 0
      %1842 = vmatprep.subr.bf16.mxu0 0
      %1843 = vmatpush1.bf16.msra.mxu0 0
      %1844 = vmatprep.subr.bf16.mxu0 0
      %1845 = vmatpush1.bf16.msra.mxu0 0
      %1846 = vmatprep.subr.bf16.mxu0 0
      %1847 = vmatpush1.bf16.msra.mxu0 0
      %1848 = vmatprep.subr.bf16.mxu0 0
      %1849 = vmatpush1.bf16.msra.mxu0 0
      %1850 = vmatprep.subr.bf16.mxu0 0
      %1851 = vmatpush1.bf16.msra.mxu0 0
      %1852 = vmatprep.subr.bf16.mxu0 0
      %1853 = vmatpush1.bf16.msra.mxu0 0
      %1854 = vmatprep.subr.bf16.mxu0 0
      %1855 = vmatpush1.bf16.msra.mxu0 0
      %1856 = vmatprep.subr.bf16.mxu0 0
      %1857 = vmatpush1.bf16.msra.mxu0 0
      %1858 = vmatprep.subr.bf16.mxu0 0
      %1859 = vmatpush1.bf16.msra.mxu0 0
      %1860 = vmatprep.subr.bf16.mxu0 0
      %1861 = vmatpush1.bf16.msra.mxu0 0
      %1862 = vmatprep.subr.bf16.mxu0 0
      %1863 = vmatpush1.bf16.msra.mxu0 0
      %1864 = vmatprep.subr.bf16.mxu0 0
      %1865 = vmatpush1.bf16.msra.mxu0 0
      %1866 = vmatprep.subr.bf16.mxu0 0
      %1867 = vmatpush1.bf16.msra.mxu0 0
      %1868 = vmatprep.subr.bf16.mxu0 0
      %1869 = vmatpush1.bf16.msra.mxu0 0
      %1870 = vmatprep.mubr.bf16.mxu0 0
      %1871 = vmatmul.mubr.bf16.gmra.mrb[0].mxu0 %v1809
      %v1872 = vpop.f32.mrb[0].mxu0
      %v1873 = vadd.f32 0.0, %v1872
      %v1874 = vpop.f32.mrb[0].mxu0
      %v1875 = vpop.f32.mrb[0].mxu0
      %v1876 = vadd.f32 0.0, %v1875
      %v1877 = vpop.f32.mrb[0].mxu0
      %1878 = vmatprep.mubr.bf16.mxu0 0
      %1879 = vmatmul.mubr.bf16.gmra.mrb[0].mxu0 %v1812
      %v1880 = vpop.f32.mrb[0].mxu0
      %v1881 = vadd.f32 0.0, %v1880
      %v1882 = vpop.f32.mrb[0].mxu0
      %v1883 = vpop.f32.mrb[0].mxu0
      %v1884 = vadd.f32 0.0, %v1883
      %v1885 = vpop.f32.mrb[0].mxu0
      %1886 = vmatprep.mubr.bf16.mxu0 0
      %1887 = vmatmul.mubr.bf16.gmra.mrb[0].mxu0 %v1815
      %v1888 = vpop.f32.mrb[0].mxu0
      %v1889 = vadd.f32 0.0, %v1888
      %v1890 = vpop.f32.mrb[0].mxu0
      %v1891 = vpop.f32.mrb[0].mxu0
      %v1892 = vadd.f32 0.0, %v1891
      %v1893 = vpop.f32.mrb[0].mxu0
      %1894 = vmatprep.mubr.bf16.mxu0 0
      %1895 = vmatmul.mubr.bf16.gmra.mrb[0].mxu0 %v1818
      %v1896 = vpop.f32.mrb[0].mxu0
      %v1897 = vadd.f32 0.0, %v1896
      %v1898 = vpop.f32.mrb[0].mxu0
      %v1899 = vpop.f32.mrb[0].mxu0
      %v1900 = vadd.f32 0.0, %v1899
      %v1901 = vpop.f32.mrb[0].mxu0
      %1902 = vmatprep.mubr.bf16.mxu0 0
      %1903 = vmatmul.mubr.bf16.gmra.mrb[0].mxu0 %v1821
      %v1904 = vpop.f32.mrb[0].mxu0
      %v1905 = vadd.f32 0.0, %v1904
      %v1906 = vpop.f32.mrb[0].mxu0
      %v1907 = vpop.f32.mrb[0].mxu0
      %v1908 = vadd.f32 0.0, %v1907
      %v1909 = vpop.f32.mrb[0].mxu0
      %1910 = vmatprep.mubr.bf16.mxu0 0
      %1911 = vmatmul.mubr.bf16.gmra.mrb[0].mxu0 %v1824
      %v1912 = vpop.f32.mrb[0].mxu0
      %v1913 = vadd.f32 0.0, %v1912
      %v1914 = vpop.f32.mrb[0].mxu0
      %v1915 = vpop.f32.mrb[0].mxu0
      %v1916 = vadd.f32 0.0, %v1915
      %v1917 = vpop.f32.mrb[0].mxu0
      %1918 = vmatprep.mubr.bf16.mxu0 0
      %1919 = vmatmul.mubr.bf16.gmra.mrb[0].mxu0 %v1827
      %v1920 = vpop.f32.mrb[0].mxu0
      %v1921 = vadd.f32 0.0, %v1920
      %v1922 = vpop.f32.mrb[0].mxu0
      %v1923 = vpop.f32.mrb[0].mxu0
      %v1924 = vadd.f32 0.0, %v1923
      %v1925 = vpop.f32.mrb[0].mxu0
      %1926 = vmatprep.mubr.bf16.mxu0 0
      %1927 = vmatmul.mubr.bf16.gmra.mrb[0].mxu0 %v1830
      %v1928 = vpop.f32.mrb[0].mxu0
      %v1929 = vadd.f32 0.0, %v1928
      %v1930 = vpop.f32.mrb[0].mxu0
      %v1931 = vpop.f32.mrb[0].mxu0
      %v1932 = vadd.f32 0.0, %v1931
      %v1933 = vpop.f32.mrb[0].mxu0
      %1934 = vmatprep.mubr.bf16.mxu0 0
      %1935 = vmatmul.mubr.bf16.gmra.mrb[0].mxu0 %v1833
      %v1936 = vpop.f32.mrb[0].mxu0
      %v1937 = vadd.f32 0.0, %v1936
      %v1938 = vpop.f32.mrb[0].mxu0
      %v1939 = vpop.f32.mrb[0].mxu0
      %v1940 = vadd.f32 0.0, %v1939
      %v1941 = vpop.f32.mrb[0].mxu0
      %1942 = vdwg.mxu0
      %v1943 = vadd.f32 %v1694, %v1873
      %v1944 = vadd.f32 %v1695, %v1876
      %v1945 = vadd.f32 %v1696, %v1881
      %v1946 = vadd.f32 %v1697, %v1884
      %v1947 = vadd.f32 %v1698, %v1889
      %v1948 = vadd.f32 %v1699, %v1892
      %v1949 = vadd.f32 %v1700, %v1897
      %v1950 = vadd.f32 %v1701, %v1900
      %v1951 = vadd.f32 %v1702, %v1905
      %v1952 = vadd.f32 %v1703, %v1908
      %v1953 = vadd.f32 %v1704, %v1913
      %v1954 = vadd.f32 %v1705, %v1916
      %v1955 = vadd.f32 %v1706, %v1921
      %v1956 = vadd.f32 %v1707, %v1924
      %v1957 = vadd.f32 %v1708, %v1929
      %v1958 = vadd.f32 %v1709, %v1932
      %v1959 = vadd.f32 %v1710, %v1937
      %v1960 = vadd.f32 %v1711, %v1940
      %v1961 = vld [vmem:[%s195 + $0x10] sm:$0x8]
      %s1962 = scalar_lea.vmem %s199, 16
      %v1963 = vld [vmem:[%s1962] sm:$0x3]
      %v1965 = vunpack.c.l.b16 %v1961
      %v1966 = vpack.c.b16 %v1512, %v1965
      %vm1967 = vcmask 1044480
      %v1968 = vrot.slane %v1966, 3
      %v1969 = vrot.slane %v1531, 3
      %v1970 = vsel %vm1967, %v1968, %v1969
      %v1971 = vrot.slane %v1532, 3
      %v1972 = vsel %vm1967, %v1969, %v1971
      %v1973 = vrot.slane %v1533, 3
      %v1974 = vsel %vm1967, %v1971, %v1973
      %v1975 = vrot.slane %v1534, 3
      %v1976 = vsel %vm1967, %v1973, %v1975
      %v1977 = vrot.slane %v1535, 3
      %v1978 = vsel %vm1967, %v1975, %v1977
      %v1979 = vrot.slane %v1536, 3
      %v1980 = vsel %vm1967, %v1977, %v1979
      %v1981 = vrot.slane %v1537, 3
      %v1982 = vsel %vm1967, %v1979, %v1981
      %v1983 = vrot.slane %v1538, 3
      %v1984 = vsel %vm1967, %v1981, %v1983
      %v1985 = vrot.slane %v1717, 3
      %v1986 = vsel %vm1967, %v1983, %v1985
      %v1988 = vsel %vm360, %v1970, 0
      %v1991 = vsel %vm360, %v1972, 0
      %v1994 = vsel %vm360, %v1974, 0
      %v1997 = vsel %vm360, %v1976, 0
      %v2000 = vsel %vm360, %v1978, 0
      %v2003 = vsel %vm360, %v1980, 0
      %v2006 = vsel %vm360, %v1982, 0
      %v2009 = vsel %vm360, %v1984, 0
      %v2012 = vsel %vm360, %v1986, 0
      %v2015 = vsel %vm388, %v1963, 0
      %2017 = vmatprep.subr.bf16.mxu0 0
      %2018 = vmatpush1.bf16.msra.mxu0 %v2015
      %2019 = vmatprep.subr.bf16.mxu0 0
      %2020 = vmatpush1.bf16.msra.mxu0 0
      %2021 = vmatprep.subr.bf16.mxu0 0
      %2022 = vmatpush1.bf16.msra.mxu0 0
      %2023 = vmatprep.subr.bf16.mxu0 0
      %2024 = vmatpush1.bf16.msra.mxu0 0
      %2025 = vmatprep.subr.bf16.mxu0 0
      %2026 = vmatpush1.bf16.msra.mxu0 0
      %2027 = vmatprep.subr.bf16.mxu0 0
      %2028 = vmatpush1.bf16.msra.mxu0 0
      %2029 = vmatprep.subr.bf16.mxu0 0
      %2030 = vmatpush1.bf16.msra.mxu0 0
      %2031 = vmatprep.subr.bf16.mxu0 0
      %2032 = vmatpush1.bf16.msra.mxu0 0
      %2033 = vmatprep.subr.bf16.mxu0 0
      %2034 = vmatpush1.bf16.msra.mxu0 0
      %2035 = vmatprep.subr.bf16.mxu0 0
      %2036 = vmatpush1.bf16.msra.mxu0 0
      %2037 = vmatprep.subr.bf16.mxu0 0
      %2038 = vmatpush1.bf16.msra.mxu0 0
      %2039 = vmatprep.subr.bf16.mxu0 0
      %2040 = vmatpush1.bf16.msra.mxu0 0
      %2041 = vmatprep.subr.bf16.mxu0 0
      %2042 = vmatpush1.bf16.msra.mxu0 0
      %2043 = vmatprep.subr.bf16.mxu0 0
      %2044 = vmatpush1.bf16.msra.mxu0 0
      %2045 = vmatprep.subr.bf16.mxu0 0
      %2046 = vmatpush1.bf16.msra.mxu0 0
      %2047 = vmatprep.subr.bf16.mxu0 0
      %2048 = vmatpush1.bf16.msra.mxu0 0
      %2049 = vmatprep.mubr.bf16.mxu0 0
      %2050 = vmatmul.mubr.bf16.gmra.mrb[0].mxu0 %v1988
      %v2051 = vpop.f32.mrb[0].mxu0
      %v2052 = vadd.f32 0.0, %v2051
      %v2053 = vpop.f32.mrb[0].mxu0
      %v2054 = vpop.f32.mrb[0].mxu0
      %v2055 = vadd.f32 0.0, %v2054
      %v2056 = vpop.f32.mrb[0].mxu0
      %2057 = vmatprep.mubr.bf16.mxu0 0
      %2058 = vmatmul.mubr.bf16.gmra.mrb[0].mxu0 %v1991
      %v2059 = vpop.f32.mrb[0].mxu0
      %v2060 = vadd.f32 0.0, %v2059
      %v2061 = vpop.f32.mrb[0].mxu0
      %v2062 = vpop.f32.mrb[0].mxu0
      %v2063 = vadd.f32 0.0, %v2062
      %v2064 = vpop.f32.mrb[0].mxu0
      %2065 = vmatprep.mubr.bf16.mxu0 0
      %2066 = vmatmul.mubr.bf16.gmra.mrb[0].mxu0 %v1994
      %v2067 = vpop.f32.mrb[0].mxu0
      %v2068 = vadd.f32 0.0, %v2067
      %v2069 = vpop.f32.mrb[0].mxu0
      %v2070 = vpop.f32.mrb[0].mxu0
      %v2071 = vadd.f32 0.0, %v2070
      %v2072 = vpop.f32.mrb[0].mxu0
      %2073 = vmatprep.mubr.bf16.mxu0 0
      %2074 = vmatmul.mubr.bf16.gmra.mrb[0].mxu0 %v1997
      %v2075 = vpop.f32.mrb[0].mxu0
      %v2076 = vadd.f32 0.0, %v2075
      %v2077 = vpop.f32.mrb[0].mxu0
      %v2078 = vpop.f32.mrb[0].mxu0
      %v2079 = vadd.f32 0.0, %v2078
      %v2080 = vpop.f32.mrb[0].mxu0
      %2081 = vmatprep.mubr.bf16.mxu0 0
      %2082 = vmatmul.mubr.bf16.gmra.mrb[0].mxu0 %v2000
      %v2083 = vpop.f32.mrb[0].mxu0
      %v2084 = vadd.f32 0.0, %v2083
      %v2085 = vpop.f32.mrb[0].mxu0
      %v2086 = vpop.f32.mrb[0].mxu0
      %v2087 = vadd.f32 0.0, %v2086
      %v2088 = vpop.f32.mrb[0].mxu0
      %2089 = vmatprep.mubr.bf16.mxu0 0
      %2090 = vmatmul.mubr.bf16.gmra.mrb[0].mxu0 %v2003
      %v2091 = vpop.f32.mrb[0].mxu0
      %v2092 = vadd.f32 0.0, %v2091
      %v2093 = vpop.f32.mrb[0].mxu0
      %v2094 = vpop.f32.mrb[0].mxu0
      %v2095 = vadd.f32 0.0, %v2094
      %v2096 = vpop.f32.mrb[0].mxu0
      %2097 = vmatprep.mubr.bf16.mxu0 0
      %2098 = vmatmul.mubr.bf16.gmra.mrb[0].mxu0 %v2006
      %v2099 = vpop.f32.mrb[0].mxu0
      %v2100 = vadd.f32 0.0, %v2099
      %v2101 = vpop.f32.mrb[0].mxu0
      %v2102 = vpop.f32.mrb[0].mxu0
      %v2103 = vadd.f32 0.0, %v2102
      %v2104 = vpop.f32.mrb[0].mxu0
      %2105 = vmatprep.mubr.bf16.mxu0 0
      %2106 = vmatmul.mubr.bf16.gmra.mrb[0].mxu0 %v2009
      %v2107 = vpop.f32.mrb[0].mxu0
      %v2108 = vadd.f32 0.0, %v2107
      %v2109 = vpop.f32.mrb[0].mxu0
      %v2110 = vpop.f32.mrb[0].mxu0
      %v2111 = vadd.f32 0.0, %v2110
      %v2112 = vpop.f32.mrb[0].mxu0
      %2113 = vmatprep.mubr.bf16.mxu0 0
      %2114 = vmatmul.mubr.bf16.gmra.mrb[0].mxu0 %v2012
      %v2115 = vpop.f32.mrb[0].mxu0
      %v2116 = vadd.f32 0.0, %v2115
      %v2117 = vpop.f32.mrb[0].mxu0
      %v2118 = vpop.f32.mrb[0].mxu0
      %v2119 = vadd.f32 0.0, %v2118
      %v2120 = vpop.f32.mrb[0].mxu0
      %2121 = vdwg.mxu0
      %v2122 = vadd.f32 %v1943, %v2052
      %v2123 = vadd.f32 %v1944, %v2055
      %v2124 = vadd.f32 %v1945, %v2060
      %v2125 = vadd.f32 %v1946, %v2063
      %v2126 = vadd.f32 %v1947, %v2068
      %v2127 = vadd.f32 %v1948, %v2071
      %v2128 = vadd.f32 %v1949, %v2076
      %v2129 = vadd.f32 %v1950, %v2079
      %v2130 = vadd.f32 %v1951, %v2084
      %v2131 = vadd.f32 %v1952, %v2087
      %v2132 = vadd.f32 %v1953, %v2092
      %v2133 = vadd.f32 %v1954, %v2095
      %v2134 = vadd.f32 %v1955, %v2100
      %v2135 = vadd.f32 %v1956, %v2103
      %v2136 = vadd.f32 %v1957, %v2108
      %v2137 = vadd.f32 %v1958, %v2111
      %v2138 = vadd.f32 %v1959, %v2116
      %v2139 = vadd.f32 %v1960, %v2119
      %v2140 = vmax.f32 %v2122, 0.0
      %v2141 = vmax.f32 %v2123, 0.0
      %v2142 = vmax.f32 %v2124, 0.0
      %v2143 = vmax.f32 %v2125, 0.0
      %v2144 = vmax.f32 %v2126, 0.0
      %v2145 = vmax.f32 %v2127, 0.0
      %v2146 = vmax.f32 %v2128, 0.0
      %v2147 = vmax.f32 %v2129, 0.0
      %v2148 = vmax.f32 %v2130, 0.0
      %v2149 = vmax.f32 %v2131, 0.0
      %v2150 = vmax.f32 %v2132, 0.0
      %v2151 = vmax.f32 %v2133, 0.0
      %v2152 = vmax.f32 %v2134, 0.0
      %v2153 = vmax.f32 %v2135, 0.0
      %v2154 = vmax.f32 %v2136, 0.0
      %v2155 = vmax.f32 %v2137, 0.0
      %v2156 = vmax.f32 %v2138, 0.0
      %v2157 = vmax.f32 %v2139, 0.0
      %2158 = vst [vmem:[%s211] sm:$0xff] %v2140
      %2159 = vst [vmem:[%s211 + $0x8] sm:$0xff] %v2141
      %2160 = vst [vmem:[%s211 + $0x10] sm:$0xff] %v2142
      %2161 = vst [vmem:[%s211 + $0x18] sm:$0xff] %v2143
      %2162 = vst [vmem:[%s211 + $0x20] sm:$0xff] %v2144
      %2163 = vst [vmem:[%s211 + $0x28] sm:$0xff] %v2145
      %2164 = vst [vmem:[%s211 + $0x30] sm:$0xff] %v2146
      %2165 = vst [vmem:[%s211 + $0x38] sm:$0xff] %v2147
      %2166 = vst [vmem:[%s211 + $0x40] sm:$0xff] %v2148
      %2167 = vst [vmem:[%s211 + $0x48] sm:$0xff] %v2149
      %2168 = vst [vmem:[%s211 + $0x50] sm:$0xff] %v2150
      %2169 = vst [vmem:[%s211 + $0x58] sm:$0xff] %v2151
      %2170 = vst [vmem:[%s211 + $0x60] sm:$0xff] %v2152
      %2171 = vst [vmem:[%s211 + $0x68] sm:$0xff] %v2153
      %2172 = vst [vmem:[%s211 + $0x70] sm:$0xff] %v2154
      %2173 = vst [vmem:[%s211 + $0x78] sm:$0xff] %v2155
      %2174 = vst [vmem:[%s211 + $0x80] sm:$0xff] %v2156
      %2175 = vst [vmem:[%s211 + $0x88] sm:$0xff] %v2157
      %p2176 = scmp.lt.s32.totalorder %s18, 1
      %s2177 = scalar_select %p2176, %s18, 1
      %p2178 = scmp.lt.s32.totalorder %s19, 1
      %s2179 = scalar_select %p2178, %s19, 1
      %p2180 = scmp.lt.s32.totalorder %s20, 0
      %s2181 = scalar_select %p2180, %s20, 0
      %s2182 = smul.addr %s2179, 18
      %s2183 = sadd.s32 %s2181, %s2182
      %s2184 = smul.addr %s2177, 36
      %s2185 = sadd.s32 %s2183, %s2184
      %s2186 = smul.addr %s2185, 8
      %s2187 = scalar_lea.vmem %s2, %s2186
      // Predicated region
      $region29: #{conv_relu_forward.1} parent=27 // pred_check
        %p2188 = pneg %p108
      $region30: #{conv_relu_forward.1} parent=27 // pred_check_branch
        %2190 = sbr.rel (%p2188) target = $region32
      $region31: #{conv_relu_forward.1} parent=27 // pred_region
        _
      $region32: #{conv_relu_forward.1} parent=27 // pred_fallthru
        _
    $region28: #{conv_relu_forward.1} parent=5 // pred_fallthru
      _
    %p2191 = scmp.le.s32.totalorder 2, %s8
    // Predicated region
    $region33: #{conv_relu_forward.1} parent=5 // pred_check
      %p2192 = pneg %p2191
    $region34: #{conv_relu_forward.1} parent=5 // pred_check_branch
      %2194 = sbr.rel (%p2192) target = $region36
    $region35: #{conv_relu_forward.1} parent=5 // pred_region
      %s2195 = ssub.s32 %s8, 2
      // Predicated region
      $region37: #{conv_relu_forward.1} parent=35 // pred_check
        %p2196 = pneg %p114
      $region38: #{conv_relu_forward.1} parent=35 // pred_check_branch
        %2198 = sbr.rel (%p2196) target = $region40
      $region39: #{conv_relu_forward.1} parent=35 // pred_region
        %p2199 = scmp.lt.s32.totalorder %s21, 1
        %s2200 = scalar_select %p2199, %s21, 1
        %p2201 = scmp.lt.s32.totalorder %s22, 1
        %s2202 = scalar_select %p2201, %s22, 1
        %p2203 = scmp.lt.s32.totalorder %s23, 0
        %s2204 = scalar_select %p2203, %s23, 0
        %s2205 = smul.addr %s2202, 18
        %s2206 = sadd.s32 %s2204, %s2205
        %s2207 = smul.addr %s2200, 36
        %s2208 = sadd.s32 %s2206, %s2207
        %s2209 = smul.addr %s2208, 8
        %s2210 = scalar_lea.vmem %s2, %s2209
      $region40: #{conv_relu_forward.1} parent=35 // pred_fallthru
        _
    $region36: #{conv_relu_forward.1} parent=5 // pred_fallthru
      _
  $region6: #{conv_relu_forward.1} parent=0 // loop_footer
    %s12 = sadd.s32 1, %s8
  $region7: #{conv_relu_forward.1} parent=0 // loop_footer_branch
    %7 = sbr.rel target = $region3
  $region8: #{conv_relu_forward.1} parent=0 // loop_exit
    _

</llo_original>
